<compile_context>
chip_gen: v6e
topology: v6e:2x2x1
jax: 0.10.0
libtpu: 0.0.40
codegen_flags: <defaults>
</compile_context>

<pallas_src>
import functools

import jax
import jax.numpy as jnp
from jax.experimental import pallas as pl
from jax.experimental.pallas import tpu as pltpu

NUM_FEATURES = 6165
AA_NUM = 21
HIDDEN_DIM = 128
OUTPUT_DIM = 486
BN_EPS = 1e-5

C = HIDDEN_DIM + AA_NUM          # 149
CP = 256                         # 149 padded to lane multiple
C2P = 384                        # 298 padded
C4P = 640                        # 596 padded
HEAD_HID = 1024
OUT_P = 512                      # 486 padded
KF = 6272                        # 6165 padded to 49*128 (fused feature contraction)
TKF = 896                        # 7 * 128, divides KF exactly
VMEM_LIMIT = 48 * 1024 * 1024    # below v7x 64 MiB physical; >> actual usage here


def _round_up(x, m):
    return (x + m - 1) // m * m


def _row_tile(n):
    for t in (256, 128):
        if n % t == 0:
            return t
    return n


def _node_tile(n):
    for t in (512, 256, 128):
        if n % t == 0:
            return t
    return n


# ------------------------- Pallas kernels ---------------------------------

def _feature_kernel(x_ref, wc_ref, bc_ref, wn_ref, o_ref, acc_ref):
    """relu(x_pad @ Wc + bc) (== concat(fl2, fl1) padded) then @ W_conv1."""
    k = pl.program_id(1)

    @pl.when(k == 0)
    def _():
        acc_ref[...] = jnp.zeros_like(acc_ref)

    acc_ref[...] += jnp.dot(x_ref[...], wc_ref[...],
                            preferred_element_type=jnp.float32)

    @pl.when(k == pl.num_programs(1) - 1)
    def _():
        feat = jnp.maximum(acc_ref[...] + bc_ref[...], 0.0)
        o_ref[...] = jnp.dot(feat.astype(jnp.bfloat16), wn_ref[...],
                             preferred_element_type=jnp.float32).astype(o_ref.dtype)


def pallas_feature(xc, wc, bc, wn):
    np_, kf = xc.shape
    cp = wc.shape[1]
    out_w = wn.shape[1]
    tm = _row_tile(np_)
    tkf = TKF if kf % TKF == 0 else kf
    grid = (np_ // tm, kf // tkf)
    return pl.pallas_call(
        _feature_kernel,
        out_shape=jax.ShapeDtypeStruct((np_, out_w), jnp.bfloat16),
        grid_spec=pltpu.PrefetchScalarGridSpec(
            num_scalar_prefetch=0, grid=grid,
            in_specs=[pl.BlockSpec((tm, tkf), lambda i, k: (i, k)),
                      pl.BlockSpec((tkf, cp), lambda i, k: (k, 0)),
                      pl.BlockSpec((1, cp), lambda i, k: (0, 0)),
                      pl.BlockSpec((cp, out_w), lambda i, k: (0, 0))],
            out_specs=pl.BlockSpec((tm, out_w), lambda i, k: (i, 0)),
            scratch_shapes=[pltpu.VMEM((tm, cp), jnp.float32)]),
        compiler_params=pltpu.CompilerParams(
            dimension_semantics=("parallel", "arbitrary"),
            vmem_limit_bytes=VMEM_LIMIT),
    )(xc, wc, bc, wn)


def _gcn_kernel(*refs, fuse_next):
    """h = relu(A_hat @ XW + b); optionally output h @ W_next (next layer's XW)."""
    if fuse_next:
        a_ref, xw_ref, b_ref, wn_ref, o_ref, acc_ref = refs
    else:
        a_ref, xw_ref, b_ref, o_ref, acc_ref = refs
        wn_ref = None
    k = pl.program_id(1)

    @pl.when(k == 0)
    def _():
        acc_ref[...] = jnp.zeros_like(acc_ref)

    acc_ref[...] += jnp.dot(a_ref[...], xw_ref[...],
                            preferred_element_type=jnp.float32)

    @pl.when(k == pl.num_programs(1) - 1)
    def _():
        h = jnp.maximum(acc_ref[...] + b_ref[...], 0.0)
        if fuse_next:
            o_ref[...] = jnp.dot(h.astype(jnp.bfloat16), wn_ref[...],
                                 preferred_element_type=jnp.float32).astype(o_ref.dtype)
        else:
            o_ref[...] = h.astype(o_ref.dtype)


def pallas_gcn(a_hat, xw, b, w_next=None):
    np_ = a_hat.shape[0]
    h = xw.shape[1]
    out_w = w_next.shape[1] if w_next is not None else h
    tm = _row_tile(np_)
    tk = _node_tile(np_)

    in_specs = [pl.BlockSpec((tm, tk), lambda i, k: (i, k)),
                pl.BlockSpec((tk, h), lambda i, k: (k, 0)),
                pl.BlockSpec((1, h), lambda i, k: (0, 0))]
    args = [a_hat, xw, b]
    if w_next is not None:
        in_specs.append(pl.BlockSpec((h, out_w), lambda i, k: (0, 0)))
        args.append(w_next)

    return pl.pallas_call(
        functools.partial(_gcn_kernel, fuse_next=w_next is not None),
        out_shape=jax.ShapeDtypeStruct((np_, out_w), jnp.bfloat16),
        grid_spec=pltpu.PrefetchScalarGridSpec(
            num_scalar_prefetch=0, grid=(np_ // tm, np_ // tk),
            in_specs=in_specs,
            out_specs=pl.BlockSpec((tm, out_w), lambda i, k: (i, 0)),
            scratch_shapes=[pltpu.VMEM((tm, h), jnp.float32)]),
        compiler_params=pltpu.CompilerParams(
            dimension_semantics=("parallel", "arbitrary"),
            vmem_limit_bytes=VMEM_LIMIT),
    )(*args)


def _pool_head_kernel(p_ref, h_ref, ic_ref, w1_ref, b1_ref, w2_ref, b2_ref,
                      o_ref, pooled_ref):
    """global mean pool (as tiled matmul) + fc_g1(BN-folded) + ReLU + fc_g2 + sigmoid."""
    k = pl.program_id(0)

    @pl.when(k == 0)
    def _():
        pooled_ref[...] = jnp.zeros_like(pooled_ref)

    pooled_ref[...] += jnp.dot(p_ref[...], h_ref[...],
                               preferred_element_type=jnp.float32)

    @pl.when(k == pl.num_programs(0) - 1)
    def _():
        g = (pooled_ref[...] * ic_ref[...]).astype(jnp.bfloat16)   # mean pool
        h1 = jnp.maximum(jnp.dot(g, w1_ref[...],
                                 preferred_element_type=jnp.float32) + b1_ref[...], 0.0)
        # TODO(synk): dropout is identity and BN uses running stats (eval mode);
        # training-mode batch statistics / dropout randomness not reproduced.
        y = jnp.dot(h1.astype(jnp.bfloat16), w2_ref[...],
                    preferred_element_type=jnp.float32) + b2_ref[...]
        o_ref[...] = jax.nn.sigmoid(y)


def pallas_pool_head(onehot, h3, inv_cnt, w1, b1, w2, b2):
    gp, np_ = onehot.shape
    hdim = h3.shape[1]
    hid = w1.shape[1]
    outw = w2.shape[1]
    tk = _node_tile(np_)
    return pl.pallas_call(
        _pool_head_kernel,
        out_shape=jax.ShapeDtypeStruct((gp, outw), jnp.float32),
        grid_spec=pltpu.PrefetchScalarGridSpec(
            num_scalar_prefetch=0, grid=(np_ // tk,),
            in_specs=[pl.BlockSpec((gp, tk), lambda k: (0, k)),
                      pl.BlockSpec((tk, hdim), lambda k: (k, 0)),
                      pl.BlockSpec((gp, 1), lambda k: (0, 0)),
                      pl.BlockSpec((hdim, hid), lambda k: (0, 0)),
                      pl.BlockSpec((1, hid), lambda k: (0, 0)),
                      pl.BlockSpec((hid, outw), lambda k: (0, 0)),
                      pl.BlockSpec((1, outw), lambda k: (0, 0))],
            out_specs=pl.BlockSpec((gp, outw), lambda k: (0, 0)),
            scratch_shapes=[pltpu.VMEM((gp, hdim), jnp.float32)]),
        compiler_params=pltpu.CompilerParams(
            dimension_semantics=("arbitrary",),
            vmem_limit_bytes=VMEM_LIMIT),
    )(onehot, h3, inv_cnt, w1, b1, w2, b2)


# ------------------------- Glue (plain JAX) --------------------------------

def build_norm_adj(edge_index, np_):
    """Dense D^-1/2 (A + I) D^-1/2 (PyG GCNConv norm). Padded nodes get a self
    loop only, so they are isolated and never leak into real rows."""
    src, dst = edge_index[0], edge_index[1]
    a = jnp.zeros((np_, np_), jnp.float32)
    a = a.at[dst, src].add(1.0)                    # message j -> i lands in row i
    a = a + jnp.eye(np_, dtype=jnp.float32)        # self loops (keeps deg >= 1)
    deg = a.sum(axis=1)
    dinv = jax.lax.rsqrt(deg)
    return a * dinv[:, None] * dinv[None, :]


def build_mean_pool(batch, n, np_, num_graphs, gp):
    """0/1 assignment matrix (exact in bf16) + per-graph 1/count (f32)."""
    batch_p = jnp.full((np_,), -1, jnp.int32).at[:n].set(batch.astype(jnp.int32))
    onehot = (batch_p[None, :] == jnp.arange(gp, dtype=jnp.int32)[:, None]).astype(jnp.float32)
    counts = jnp.maximum(onehot.sum(axis=1, keepdims=True), 1.0)
    return onehot.astype(jnp.bfloat16), (1.0 / counts).astype(jnp.float32)


def init_linear(key, fin, fout):
    kw, kb = jax.random.split(key)
    bound = 1.0 / jnp.sqrt(jnp.float32(fin))
    w = jax.random.uniform(kw, (fin, fout), jnp.float32, -bound, bound)
    b = jax.random.uniform(kb, (fout,), jnp.float32, -bound, bound)
    return w, b


def init_params(key):
    ks = jax.random.split(key, 8)
    p = {}
    p["fl1_w"], p["fl1_b"] = init_linear(ks[0], NUM_FEATURES - AA_NUM, HIDDEN_DIM)
    p["fl2_w"], p["fl2_b"] = init_linear(ks[1], AA_NUM, AA_NUM)
    p["c1_w"], p["c1_b"] = init_linear(ks[2], C, C)
    p["c2_w"], p["c2_b"] = init_linear(ks[3], C, C * 2)
    p["c3_w"], p["c3_b"] = init_linear(ks[4], C * 2, C * 4)
    p["g1_w"], p["g1_b"] = init_linear(ks[5], C * 4, HEAD_HID)
    p["g2_w"], p["g2_b"] = init_linear(ks[6], HEAD_HID, OUTPUT_DIM)
    p["bn_gamma"] = jnp.ones((HEAD_HID,), jnp.float32)
    p["bn_beta"] = jnp.zeros((HEAD_HID,), jnp.float32)
    p["bn_rm"] = jnp.zeros((HEAD_HID,), jnp.float32)
    p["bn_rv"] = jnp.ones((HEAD_HID,), jnp.float32)
    return p


def _pad2(w, rows, cols):
    out = jnp.zeros((rows, cols), jnp.float32)
    return out.at[: w.shape[0], : w.shape[1]].set(w)


def _pad_row(b, n):
    out = jnp.zeros((1, n), jnp.float32)
    return out.at[0, : b.shape[0]].set(b)


def prepare_params(p):
    """Zero-pad to lane multiples, fold eval-BN into fc_g1, cast weights to bf16."""
    bf = jnp.bfloat16
    # Fused feature weight: one [KF, CP] matmul == concat(fl2(x[:, :21]), fl1(x[:, 21:])).
    wc = jnp.zeros((KF, CP), jnp.float32)
    wc = wc.at[:AA_NUM, :AA_NUM].set(p["fl2_w"])
    wc = wc.at[AA_NUM:NUM_FEATURES, AA_NUM:C].set(p["fl1_w"])
    bc = jnp.zeros((1, CP), jnp.float32)
    bc = bc.at[0, :AA_NUM].set(p["fl2_b"])
    bc = bc.at[0, AA_NUM:C].set(p["fl1_b"])
    # Fold BatchNorm1d (eval, running stats) into fc_g1.
    scale = p["bn_gamma"] * jax.lax.rsqrt(p["bn_rv"] + BN_EPS)
    g1_w = p["g1_w"] * scale[None, :]
    g1_b = (p["g1_b"] - p["bn_rm"]) * scale + p["bn_beta"]
    return {
        "wc": wc.astype(bf), "bc": bc,
        "w1c": _pad2(p["c1_w"], CP, CP).astype(bf),   "b1c": _pad_row(p["c1_b"], CP),
        "w2c": _pad2(p["c2_w"], CP, C2P).astype(bf),  "b2c": _pad_row(p["c2_b"], C2P),
        "w3c": _pad2(p["c3_w"], C2P, C4P).astype(bf), "b3c": _pad_row(p["c3_b"], C4P),
        "wg1": _pad2(g1_w, C4P, HEAD_HID).astype(bf), "bg1": _pad_row(g1_b, HEAD_HID),
        "wg2": _pad2(p["g2_w"], HEAD_HID, OUT_P).astype(bf),
        "bg2": _pad_row(p["g2_b"], OUT_P),
    }


def model_net_forward(pp, prot_x, edge_index, batch, num_graphs):
    n = prot_x.shape[0]
    np_ = _round_up(max(n, 1), 128)
    gp = _round_up(max(num_graphs, 1), 8)

    # Pad node features to [NP, KF] (zero rows/cols), cast matmul operand to bf16.
    xc = jnp.zeros((np_, KF), jnp.float32).at[:n, :NUM_FEATURES].set(prot_x)
    xc = xc.astype(jnp.bfloat16)
    a_hat = build_norm_adj(edge_index, np_).astype(jnp.bfloat16)
    onehot, inv_cnt = build_mean_pool(batch, n, np_, num_graphs, gp)

    # feature linears + concat (+ conv1's X@W fused into the finalize)
    xw1 = pallas_feature(xc, pp["wc"], pp["bc"], pp["w1c"])          # [NP, 256]
    # GCN stack: each call does relu(A_hat @ XW + b) and emits the next layer's X@W.
    xw2 = pallas_gcn(a_hat, xw1, pp["b1c"], pp["w2c"])               # [NP, 384]
    xw3 = pallas_gcn(a_hat, xw2, pp["b2c"], pp["w3c"])               # [NP, 640]
    h3 = pallas_gcn(a_hat, xw3, pp["b3c"], None)                     # [NP, 640]
    # gap pool + head (BN folded, dropout identity in eval)
    out = pallas_pool_head(onehot, h3, inv_cnt,
                           pp["wg1"], pp["bg1"], pp["wg2"], pp["bg2"])  # [GP, 512]
    return out[:num_graphs, :OUTPUT_DIM]


if __name__ == "__main__":
    key = jax.random.PRNGKey(0)
    k_params, k_x = jax.random.split(key)

    params = init_params(k_params)
    pp = prepare_params(params)

    # Two small graphs of 8 nodes each (bidirectional ring per graph).
    num_nodes, num_graphs = 16, 2
    prot_x = jax.random.normal(k_x, (num_nodes, NUM_FEATURES), jnp.float32)

    src, dst = [], []
    for g in range(num_graphs):
        base = g * 8
        for i in range(8):
            a_n, b_n = base + i, base + (i + 1) % 8
            src += [a_n, b_n]
            dst += [b_n, a_n]
    edge_index = jnp.array([src, dst], dtype=jnp.int32)     # [2, 32]
    batch = jnp.array([0] * 8 + [1] * 8, dtype=jnp.int32)   # [16]

    out = model_net_forward(pp, prot_x, edge_index, batch, num_graphs)
    out = jax.block_until_ready(out)
    assert out.shape == (num_graphs, OUTPUT_DIM)
    assert bool(jnp.all(jnp.isfinite(out)))
    print("KERNEL_OK")
</pallas_src>

<mosaic_0001>
module attributes {stable_mosaic.version = 11 : i64} {
  func.func @_feature_kernel(%arg0: i32, %arg1: i32, %arg2: memref<128x896xbf16, #tpu.memory_space<vmem>>, %arg3: memref<896x256xbf16, #tpu.memory_space<vmem>>, %arg4: memref<1x256xf32, #tpu.memory_space<vmem>>, %arg5: memref<256x256xbf16, #tpu.memory_space<vmem>>, %arg6: memref<128x256xbf16, #tpu.memory_space<vmem>>, %arg7: memref<128x256xf32, #tpu.memory_space<vmem>>) attributes {dimension_semantics = [#tpu.dimension_semantics<parallel>, #tpu.dimension_semantics<arbitrary>], iteration_bounds = array<i64: 1, 7>, scalar_prefetch = 0 : i64, scratch_operands = 1 : i64, tpu.core_type = #tpu.core_type<tc>, window_params = [{transform_indices = @transform_0, window_bounds = array<i64: 128, 896>}, {transform_indices = @transform_1, window_bounds = array<i64: 896, 256>}, {pipeline_mode = #tpu.pipeline_mode<synchronous>, transform_indices = @transform_2, window_bounds = array<i64: 1, 256>}, {pipeline_mode = #tpu.pipeline_mode<synchronous>, transform_indices = @transform_3, window_bounds = array<i64: 256, 256>}, {transform_indices = @transform_4, window_bounds = array<i64: 128, 256>}]} {
    %c0_i32 = arith.constant 0 : i32
    %0 = arith.cmpi eq, %arg1, %c0_i32 : i32
    %1 = arith.extui %0 : i1 to i32
    %c0_i32_0 = arith.constant 0 : i32
    %2 = arith.cmpi ne, %1, %c0_i32_0 : i32
    scf.if %2 {
      %cst_9 = arith.constant 0.000000e+00 : f32
      %12 = vector.broadcast %cst_9 : f32 to vector<128x256xf32>
      %c0_10 = arith.constant 0 : index
      %c0_11 = arith.constant 0 : index
      %13 = vector.load %arg7[%c0_10, %c0_11] : memref<128x256xf32, #tpu.memory_space<vmem>>, vector<128x256xf32>
      tpu.vector_store %arg7[%c0_10, %c0_11], %12 {strides = array<i32>} : memref<128x256xf32, #tpu.memory_space<vmem>>, vector<128x256xf32>,
    } else {
    }
    %c0 = arith.constant 0 : index
    %c0_1 = arith.constant 0 : index
    %3 = vector.load %arg7[%c0, %c0_1] : memref<128x256xf32, #tpu.memory_space<vmem>>, vector<128x256xf32>
    %c0_2 = arith.constant 0 : index
    %c0_3 = arith.constant 0 : index
    %4 = vector.load %arg2[%c0_2, %c0_3] : memref<128x896xbf16, #tpu.memory_space<vmem>>, vector<128x896xbf16>
    %c0_4 = arith.constant 0 : index
    %c0_5 = arith.constant 0 : index
    %5 = vector.load %arg3[%c0_4, %c0_5] : memref<896x256xbf16, #tpu.memory_space<vmem>>, vector<896x256xbf16>
    %cst = arith.constant dense<0.000000e+00> : vector<128x256xf32>
    %6 = tpu.matmul %4, %5, %cst {dimension_numbers = #tpu.dot_dimension_numbers<[1], [0], [0], [1], [0, 0, 1, 1], [], []>} : vector<128x896xbf16>, vector<896x256xbf16>, vector<128x256xf32> -> vector<128x256xf32>
    %7 = arith.addf %3, %6 : vector<128x256xf32>
    %c0_6 = arith.constant 0 : index
    %c0_7 = arith.constant 0 : index
    %8 = vector.load %arg7[%c0_6, %c0_7] : memref<128x256xf32, #tpu.memory_space<vmem>>, vector<128x256xf32>
    tpu.vector_store %arg7[%c0_6, %c0_7], %7 {strides = array<i32>} : memref<128x256xf32, #tpu.memory_space<vmem>>, vector<128x256xf32>,
    %c6_i32 = arith.constant 6 : i32
    %9 = arith.cmpi eq, %arg1, %c6_i32 : i32
    %10 = arith.extui %9 : i1 to i32
    %c0_i32_8 = arith.constant 0 : i32
    %11 = arith.cmpi ne, %10, %c0_i32_8 : i32
    scf.if %11 {
      %c0_9 = arith.constant 0 : index
      %c0_10 = arith.constant 0 : index
      %12 = vector.load %arg7[%c0_9, %c0_10] : memref<128x256xf32, #tpu.memory_space<vmem>>, vector<128x256xf32>
      %c0_11 = arith.constant 0 : index
      %c0_12 = arith.constant 0 : index
      %13 = vector.load %arg4[%c0_11, %c0_12] : memref<1x256xf32, #tpu.memory_space<vmem>>, vector<1x256xf32>
      %14 = vector.broadcast %13 : vector<1x256xf32> to vector<128x256xf32>
      %15 = arith.addf %12, %14 : vector<128x256xf32>
      %cst_13 = arith.constant 0.000000e+00 : f32
      %16 = vector.broadcast %cst_13 : f32 to vector<128x256xf32>
      %17 = arith.maximumf %15, %16 : vector<128x256xf32>
      %18 = arith.truncf %17 : vector<128x256xf32> to vector<128x256xbf16>
      %c0_14 = arith.constant 0 : index
      %c0_15 = arith.constant 0 : index
      %19 = vector.load %arg5[%c0_14, %c0_15] : memref<256x256xbf16, #tpu.memory_space<vmem>>, vector<256x256xbf16>
      %cst_16 = arith.constant dense<0.000000e+00> : vector<128x256xf32>
      %20 = tpu.matmul %18, %19, %cst_16 {dimension_numbers = #tpu.dot_dimension_numbers<[1], [0], [0], [1], [0, 0, 1, 1], [], []>} : vector<128x256xbf16>, vector<256x256xbf16>, vector<128x256xf32> -> vector<128x256xf32>
      %21 = arith.truncf %20 : vector<128x256xf32> to vector<128x256xbf16>
      %c0_17 = arith.constant 0 : index
      %c0_18 = arith.constant 0 : index
      %22 = vector.load %arg6[%c0_17, %c0_18] : memref<128x256xbf16, #tpu.memory_space<vmem>>, vector<128x256xbf16>
      tpu.vector_store %arg6[%c0_17, %c0_18], %21 {strides = array<i32>} : memref<128x256xbf16, #tpu.memory_space<vmem>>, vector<128x256xbf16>,
    } else {
    }
    return
  }
  func.func @transform_0(%arg0: i32, %arg1: i32) -> (i32, i32) {
    %c0_i32 = arith.constant 0 : i32
    return %arg0, %arg1 : i32, i32
  }
  func.func @transform_1(%arg0: i32, %arg1: i32) -> (i32, i32) {
    %c0_i32 = arith.constant 0 : i32
    %c0_i32_0 = arith.constant 0 : i32
    return %arg1, %c0_i32 : i32, i32
  }
  func.func @transform_2(%arg0: i32, %arg1: i32) -> (i32, i32) {
    %c0_i32 = arith.constant 0 : i32
    %c0_i32_0 = arith.constant 0 : i32
    %c0_i32_1 = arith.constant 0 : i32
    return %c0_i32, %c0_i32_0 : i32, i32
  }
  func.func @transform_3(%arg0: i32, %arg1: i32) -> (i32, i32) {
    %c0_i32 = arith.constant 0 : i32
    %c0_i32_0 = arith.constant 0 : i32
    %c0_i32_1 = arith.constant 0 : i32
    return %c0_i32, %c0_i32_0 : i32, i32
  }
  func.func @transform_4(%arg0: i32, %arg1: i32) -> (i32, i32) {
    %c0_i32 = arith.constant 0 : i32
    %c0_i32_0 = arith.constant 0 : i32
    return %arg0, %c0_i32 : i32, i32
  }
}

</mosaic_0001>

<llo_original>
// kernel: tpu_custom_call.1
$region0: #{tpu_custom_call.1}
  #allocation0 [shape = 'u32[]', space=smem, size = 0x4, offset = 0x4, fixed_abs, tag = 'smem constant byte address 0x4 - core index']
  #allocation1 [shape = 'u32[144,128]{1,0:T(1,128)}', space=vmem, size = 0x12000, scoped, tag = 'internal scratch']
  #allocation2 [shape = 'f32[128,256]{1,0:T(8,128)}', space=vmem, size = 0x20000, scoped, tag = 'scratch operand']
  %s0 = inlined_call_operand.hbm [shape: bf16[128,6272], index: 0, kind: input, shape index: {}]
  %s1 = inlined_call_operand.hbm [shape: bf16[6272,256], index: 1, kind: input, shape index: {}]
  %s2 = inlined_call_operand.hbm [shape: f32[1,256], index: 2, kind: input, shape index: {}]
  %s3 = inlined_call_operand.hbm [shape: bf16[256,256], index: 3, kind: input, shape index: {}]
  %s4 = inlined_call_operand.hbm [shape: bf16[128,256], index: 4, kind: output, shape index: {}]
  %s5 = sld [smem:[#allocation0]]
  $region73: #{tpu_custom_call.1} parent=0
    _
  %s7 = ssub.s32 1, %s5
  %s8 = scalar_select 0, %s7, %s5
  $region1: #{tpu_custom_call.1} parent=0
    #allocation3 [shape = 'u8[458752]{0}', space=vmem, size = 0x70000, scoped, tag = 'input window, operand 0']
    #allocation4 [shape = 's32[2]{0}', space=sflag, size = 0x8, scoped, tag = 'scoped memory for tpu_custom_call.1']
    #allocation5 [shape = 's32[2]{0}', space=sflag, size = 0x8, scoped, tag = 'scoped memory for tpu_custom_call.1']
    #allocation6 [shape = 'u8[917504]{0}', space=vmem, size = 0xe0000, scoped, tag = 'input window, operand 1']
    #allocation7 [shape = 's32[2]{0}', space=sflag, size = 0x8, scoped, tag = 'scoped memory for tpu_custom_call.1']
    #allocation8 [shape = 'u8[1024]{0}', space=vmem, size = 0x400, scoped, tag = 'input window, operand 2, single buffered']
    #allocation9 [shape = 'u8[131072]{0}', space=vmem, size = 0x20000, scoped, tag = 'input window, operand 3, single buffered']
    #allocation10 [shape = 's32[1]{0}', space=sflag, size = 0x4, scoped, tag = 'scoped memory for tpu_custom_call.1']
    #allocation11 [shape = 'u8[65536]{0}', space=vmem, size = 0x10000, scoped, tag = 'output window, operand 0, single buffered']
    %9 = vsyncpa [#allocation4], 0
    %s10 = scalar_lea.sflag [#allocation4], 1
    %11 = vsyncpa %s10, 0
    %12 = vsyncpa [#allocation7], 0
    %s13 = scalar_lea.sflag [#allocation7], 1
    %14 = vsyncpa %s13, 0
    %15 = vsyncpa [#allocation10], 0
    %16 = vsyncpa [#allocation5], 0
    loop: start=0, step=1, limit=9
    $region2: #{tpu_custom_call.1} parent=1 // loop_pre_header
      _
    $region3: #{tpu_custom_call.1} parent=1 // loop_header
      %s18 = sphi 0, %s22
      %p19 = scmp.ge.s32.totalorder %s18, 9
      %s25 = sphi 0, %s37
      %s26 = sphi 0, %s33
      %s27 = sphi 0, %s25
      %s28 = sphi 0, %s26
      %s29 = sphi 0, %s27
      %s30 = sphi 0, %s28
      %s42 = sphi 0, %s44
      %s45 = sphi 0, %s42
      %s46 = sphi 0, %s45
      %s62 = sphi 0, %s46
      %s68 = sphi 0, %s70
      %s71 = sphi 0, %s68
      %s72 = sphi 0, %s71
      %s88 = sphi 0, %s72
      %s92 = sphi 0, %s92
      %s94 = sphi 0, %s92
      %s95 = sphi 0, %s94
      %s109 = sphi 0, %s95
      %s113 = sphi 0, %s113
      %s115 = sphi 0, %s113
      %s116 = sphi 0, %s115
      %s130 = sphi 0, %s116
      %s136 = sphi 0, %s138
      %s139 = sphi 0, %s136
      %s140 = sphi 0, %s139
      %s156 = sphi 0, %s140
    $region4: #{tpu_custom_call.1} parent=1 // loop_header_branch
      %21 = sbr.rel (%p19) target = $region8
    $region5: #{tpu_custom_call.1} parent=1 // loop_body
      %s23 = ssub.s32 %s18, 1
      %s24 = ssub.s32 %s18, 2
      %s31 = sadd.s32 1, %s26
      %p32 = scmp.ge.s32.totalorder %s31, 7
      %s33 = scalar_select %p32, 0, %s31
      %s34 = sadd.s32 1, %s25
      %s35 = scalar_select %p32, %s34, %s25
      %p36 = scmp.ge.s32.totalorder %s35, 1
      %s37 = scalar_select %p36, 0, %s35
      %s38 = ssub.s32 %s25, %s37
      %s39 = ssub.s32 %s26, %s33
      %s40 = sor.u32 %s38, %s39
      %p41 = scmp.eq.s32.totalorder %s40, 0
      %s43 = sadd.s32 %s42, 1
      %s44 = scalar_select %p41, %s42, %s43
      %p47 = pneg %p41
      %p48 = scmp.eq.s32.totalorder %s18, 6
      %p49 = por %p47, %p48
      %p50 = scmp.ne.s32.totalorder %s42, %s45
      %p51 = scmp.eq.s32.totalorder %s18, 0
      %p52 = por %p50, %p51
      %p53 = scmp.ne.s32.totalorder %s42, %s45
      %p54 = scmp.eq.s32.totalorder %s23, 6
      %p55 = por %p53, %p54
      %p56 = scmp.ne.s32.totalorder %s45, %s46
      %p57 = scmp.eq.s32.totalorder %s23, 0
      %p58 = por %p56, %p57
      %p59 = scmp.ne.s32.totalorder %s45, %s46
      %p60 = scmp.eq.s32.totalorder %s24, 6
      %p61 = por %p59, %p60
      %p63 = scmp.ne.s32.totalorder %s46, %s62
      %p64 = scmp.eq.s32.totalorder %s24, 0
      %p65 = por %p63, %p64
      %s66 = ssub.s32 %s26, %s33
      %p67 = scmp.eq.s32.totalorder %s66, 0
      %s69 = sadd.s32 %s68, 1
      %s70 = scalar_select %p67, %s68, %s69
      %p73 = pneg %p67
      %p74 = scmp.eq.s32.totalorder %s18, 6
      %p75 = por %p73, %p74
      %p76 = scmp.ne.s32.totalorder %s68, %s71
      %p77 = scmp.eq.s32.totalorder %s18, 0
      %p78 = por %p76, %p77
      %p79 = scmp.ne.s32.totalorder %s68, %s71
      %p80 = scmp.eq.s32.totalorder %s23, 6
      %p81 = por %p79, %p80
      %p82 = scmp.ne.s32.totalorder %s71, %s72
      %p83 = scmp.eq.s32.totalorder %s23, 0
      %p84 = por %p82, %p83
      %p85 = scmp.ne.s32.totalorder %s71, %s72
      %p86 = scmp.eq.s32.totalorder %s24, 6
      %p87 = por %p85, %p86
      %p89 = scmp.ne.s32.totalorder %s72, %s88
      %p90 = scmp.eq.s32.totalorder %s24, 0
      %p91 = por %p89, %p90
      %s93 = sadd.s32 %s92, 1
      %p96 = scmp.eq.s32.totalorder %s18, 6
      %p97 = scmp.ne.s32.totalorder %s92, %s94
      %p98 = scmp.eq.s32.totalorder %s18, 0
      %p99 = por %p97, %p98
      %p100 = scmp.ne.s32.totalorder %s92, %s94
      %p101 = scmp.eq.s32.totalorder %s23, 6
      %p102 = por %p100, %p101
      %p103 = scmp.ne.s32.totalorder %s94, %s95
      %p104 = scmp.eq.s32.totalorder %s23, 0
      %p105 = por %p103, %p104
      %p106 = scmp.ne.s32.totalorder %s94, %s95
      %p107 = scmp.eq.s32.totalorder %s24, 6
      %p108 = por %p106, %p107
      %p110 = scmp.ne.s32.totalorder %s95, %s109
      %p111 = scmp.eq.s32.totalorder %s24, 0
      %p112 = por %p110, %p111
      %s114 = sadd.s32 %s113, 1
      %p117 = scmp.eq.s32.totalorder %s18, 6
      %p118 = scmp.ne.s32.totalorder %s113, %s115
      %p119 = scmp.eq.s32.totalorder %s18, 0
      %p120 = por %p118, %p119
      %p121 = scmp.ne.s32.totalorder %s113, %s115
      %p122 = scmp.eq.s32.totalorder %s23, 6
      %p123 = por %p121, %p122
      %p124 = scmp.ne.s32.totalorder %s115, %s116
      %p125 = scmp.eq.s32.totalorder %s23, 0
      %p126 = por %p124, %p125
      %p127 = scmp.ne.s32.totalorder %s115, %s116
      %p128 = scmp.eq.s32.totalorder %s24, 6
      %p129 = por %p127, %p128
      %p131 = scmp.ne.s32.totalorder %s116, %s130
      %p132 = scmp.eq.s32.totalorder %s24, 0
      %p133 = por %p131, %p132
      %s134 = ssub.s32 %s25, %s37
      %p135 = scmp.eq.s32.totalorder %s134, 0
      %s137 = sadd.s32 %s136, 1
      %s138 = scalar_select %p135, %s136, %s137
      %p141 = pneg %p135
      %p142 = scmp.eq.s32.totalorder %s18, 6
      %p143 = por %p141, %p142
      %p144 = scmp.ne.s32.totalorder %s136, %s139
      %p145 = scmp.eq.s32.totalorder %s18, 0
      %p146 = por %p144, %p145
      %p147 = scmp.ne.s32.totalorder %s136, %s139
      %p148 = scmp.eq.s32.totalorder %s23, 6
      %p149 = por %p147, %p148
      %p150 = scmp.ne.s32.totalorder %s139, %s140
      %p151 = scmp.eq.s32.totalorder %s23, 0
      %p152 = por %p150, %p151
      %p153 = scmp.ne.s32.totalorder %s139, %s140
      %p154 = scmp.eq.s32.totalorder %s24, 6
      %p155 = por %p153, %p154
      %p157 = scmp.ne.s32.totalorder %s140, %s156
      %p158 = scmp.eq.s32.totalorder %s24, 0
      %p159 = por %p157, %p158
      %p160 = scmp.le.s32.totalorder 1, %s18
      %p161 = scmp.lt.s32.totalorder %s18, 8
      %p162 = pnand %p160, %p161
      %p163 = pneg %p162
      // Predicated region
      $region9: #{tpu_custom_call.1} parent=5 // pred_check
        _
      $region10: #{tpu_custom_call.1} parent=5 // pred_check_branch
        %165 = sbr.rel (%p162) target = $region12
      $region11: #{tpu_custom_call.1} parent=5 // pred_region
        %s166 = ssub.s32 %s18, 1
        // Predicated region
        $region13: #{tpu_custom_call.1} parent=11 // pred_check
          %p167 = pneg %p105
        $region14: #{tpu_custom_call.1} parent=11 // pred_check_branch
          %169 = sbr.rel (%p167) target = $region16
        $region15: #{tpu_custom_call.1} parent=11 // pred_region
          %s171 = ssub.s32 32, 32
          %172 = vsyncadd [#allocation7], %s171
          %s174 = sshll.u32 [#allocation8], 4
          %s175 = int_to_ptr.vmem [resolvable:$true] %s174
          %177 = dma.hbm_to_vmem [thread:$0]  %s2, 32, %s175, [#allocation7]
        $region16: #{tpu_custom_call.1} parent=11 // pred_fallthru
          _
        // Predicated region
        $region17: #{tpu_custom_call.1} parent=11 // pred_check
          %p178 = pneg %p126
        $region18: #{tpu_custom_call.1} parent=11 // pred_check_branch
          %180 = sbr.rel (%p178) target = $region20
        $region19: #{tpu_custom_call.1} parent=11 // pred_region
          %s182 = ssub.s32 4096, 4096
          %183 = vsyncadd [#allocation10], %s182
          %s184 = sshll.u32 [#allocation9], 4
          %s185 = int_to_ptr.vmem [resolvable:$true] %s184
          %190 = dma.hbm_to_vmem [thread:$0]  %s3, 4096, %s185, [#allocation10], 128, 128, 8
        $region20: #{tpu_custom_call.1} parent=11 // pred_fallthru
          _
      $region12: #{tpu_custom_call.1} parent=5 // pred_fallthru
        _
      %p191 = scmp.lt.s32.totalorder %s18, 7
      // Predicated region
      $region21: #{tpu_custom_call.1} parent=5 // pred_check
        %p192 = pneg %p191
      $region22: #{tpu_custom_call.1} parent=5 // pred_check_branch
        %194 = sbr.rel (%p192) target = $region24
      $region23: #{tpu_custom_call.1} parent=5 // pred_region
        // Predicated region
        $region25: #{tpu_custom_call.1} parent=23 // pred_check
          %p195 = pneg %p52
        $region26: #{tpu_custom_call.1} parent=23 // pred_check_branch
          %197 = sbr.rel (%p195) target = $region28
        $region27: #{tpu_custom_call.1} parent=23 // pred_region
          %s198 = sand.u32 %s42, 1
          %s199 = scalar_lea.sflag [#allocation4], %s198
          %s200 = sand.u32 %s42, 1
          %s201 = smul.addr %s200, 448
          %s202 = scalar_lea.vmem [#allocation3], %s201
          %s203 = smul.u32 16, %s25
          %s204 = smul.u32 7, %s26
          %s206 = ssub.s32 7168, 7168
          %207 = vsyncadd %s199, %s206
          %s208 = smul.addr %s203, 49
          %s209 = sadd.s32 %s204, %s208
          %s210 = smul.addr %s209, 64
          %s211 = scalar_lea.hbm %s0, %s210
          %s212 = sshll.u32 %s202, 4
          %s213 = int_to_ptr.vmem [resolvable:$true] %s212
          %218 = dma.hbm_to_vmem [thread:$0]  %s211, 7168, %s213, %s199, 3136, 448, 28
        $region28: #{tpu_custom_call.1} parent=23 // pred_fallthru
          _
        // Predicated region
        $region29: #{tpu_custom_call.1} parent=23 // pred_check
          %p219 = pneg %p78
        $region30: #{tpu_custom_call.1} parent=23 // pred_check_branch
          %221 = sbr.rel (%p219) target = $region32
        $region31: #{tpu_custom_call.1} parent=23 // pred_region
          %s222 = sand.u32 %s18, 1
          %s223 = scalar_lea.sflag [#allocation7], %s222
          %s224 = sand.u32 %s68, 1
          %s225 = smul.addr %s224, 896
          %s226 = scalar_lea.vmem [#allocation6], %s225
          %s227 = smul.u32 112, %s26
          %s229 = ssub.s32 14336, 14336
          %230 = vsyncadd %s223, %s229
          %s231 = smul.addr %s227, 2
          %s232 = smul.addr %s231, 64
          %s233 = scalar_lea.hbm %s1, %s232
          %s234 = sshll.u32 %s226, 4
          %s235 = int_to_ptr.vmem [resolvable:$true] %s234
          %240 = dma.hbm_to_vmem [thread:$0]  %s233, 14336, %s235, %s223, 128, 128, 8
        $region32: #{tpu_custom_call.1} parent=23 // pred_fallthru
          _
      $region24: #{tpu_custom_call.1} parent=5 // pred_fallthru
        _
      %p241 = scmp.le.s32.totalorder 1, %s18
      %p242 = scmp.lt.s32.totalorder %s18, 8
      %p243 = pnand %p241, %p242
      %p244 = pneg %p243
      // Predicated region
      $region33: #{tpu_custom_call.1} parent=5 // pred_check
        _
      $region34: #{tpu_custom_call.1} parent=5 // pred_check_branch
        %246 = sbr.rel (%p243) target = $region36
      $region35: #{tpu_custom_call.1} parent=5 // pred_region
        %s247 = ssub.s32 %s18, 1
        %s248 = sand.u32 %s45, 1
        %s249 = scalar_lea.sflag [#allocation4], %s248
        %s250 = sand.u32 %s45, 1
        %s251 = smul.addr %s250, 448
        %s252 = scalar_lea.vmem [#allocation3], %s251
        // Predicated region
        $region37: #{tpu_custom_call.1} parent=35 // pred_check
          %p253 = pneg %p58
        $region38: #{tpu_custom_call.1} parent=35 // pred_check_branch
          %255 = sbr.rel (%p253) target = $region40
        $region39: #{tpu_custom_call.1} parent=35 // pred_region
          %256 = dma.done %s249, 7168
        $region40: #{tpu_custom_call.1} parent=35 // pred_fallthru
          _
        %s257 = sand.u32 %s23, 1
        %s258 = scalar_lea.sflag [#allocation7], %s257
        %s259 = sand.u32 %s71, 1
        %s260 = smul.addr %s259, 896
        %s261 = scalar_lea.vmem [#allocation6], %s260
        // Predicated region
        $region41: #{tpu_custom_call.1} parent=35 // pred_check
          %p262 = pneg %p84
        $region42: #{tpu_custom_call.1} parent=35 // pred_check_branch
          %264 = sbr.rel (%p262) target = $region44
        $region43: #{tpu_custom_call.1} parent=35 // pred_region
          %265 = dma.done %s258, 14336
        $region44: #{tpu_custom_call.1} parent=35 // pred_fallthru
          _
        // Predicated region
        $region45: #{tpu_custom_call.1} parent=35 // pred_check
          %p266 = pneg %p105
        $region46: #{tpu_custom_call.1} parent=35 // pred_check_branch
          %268 = sbr.rel (%p266) target = $region48
        $region47: #{tpu_custom_call.1} parent=35 // pred_region
          %269 = dma.done [#allocation7], 32
        $region48: #{tpu_custom_call.1} parent=35 // pred_fallthru
          _
        // Predicated region
        $region49: #{tpu_custom_call.1} parent=35 // pred_check
          %p270 = pneg %p126
        $region50: #{tpu_custom_call.1} parent=35 // pred_check_branch
          %272 = sbr.rel (%p270) target = $region52
        $region51: #{tpu_custom_call.1} parent=35 // pred_region
          %273 = dma.done [#allocation10], 4096
        $region52: #{tpu_custom_call.1} parent=35 // pred_fallthru
          _
        %s274 = sand.u32 %s45, 1
        %s275 = scalar_lea.sflag [#allocation4], %s274
        %s276 = sand.u32 %s45, 1
        %s277 = smul.addr %s276, 448
        %s278 = scalar_lea.vmem [#allocation3], %s277
        %p279 = pneg %p58
        %p280 = pneg %p55
        %s281 = sand.u32 %s23, 1
        %s282 = scalar_lea.sflag [#allocation7], %s281
        %s283 = sand.u32 %s71, 1
        %s284 = smul.addr %s283, 896
        %s285 = scalar_lea.vmem [#allocation6], %s284
        %p286 = pneg %p84
        %p287 = pneg %p81
        %p288 = pneg %p105
        %p289 = pneg %p102
        %p290 = pneg %p126
        %p291 = pneg %p123
        %p292 = pneg %p152
        %p293 = pneg %p149
        %s294 = smul.u32 16, %s27
        %s295 = smul.u32 7, %s28
        %s296 = smul.u32 112, %s28
        %s297 = smul.u32 16, %s27
        %p299 = scmp.eq.s32.totalorder %s28, 0
        // Predicated region
        $region53: #{tpu_custom_call.1} parent=35 // pred_check
          %p300 = pneg %p299
        $region54: #{tpu_custom_call.1} parent=35 // pred_check_branch
          %302 = sbr.rel (%p300) target = $region56
        $region55: #{tpu_custom_call.1} parent=35 // pred_region
          %303 = vst [vmem:[#allocation2] sm:$0xff] 0.0
          %304 = vst [vmem:[#allocation2 + $0x8] sm:$0xff] 0.0
          %305 = vst [vmem:[#allocation2 + $0x10] sm:$0xff] 0.0
          %306 = vst [vmem:[#allocation2 + $0x18] sm:$0xff] 0.0
          %307 = vst [vmem:[#allocation2 + $0x20] sm:$0xff] 0.0
          %308 = vst [vmem:[#allocation2 + $0x28] sm:$0xff] 0.0
          %309 = vst [vmem:[#allocation2 + $0x30] sm:$0xff] 0.0
          %310 = vst [vmem:[#allocation2 + $0x38] sm:$0xff] 0.0
          %311 = vst [vmem:[#allocation2 + $0x40] sm:$0xff] 0.0
          %312 = vst [vmem:[#allocation2 + $0x48] sm:$0xff] 0.0
          %313 = vst [vmem:[#allocation2 + $0x50] sm:$0xff] 0.0
          %314 = vst [vmem:[#allocation2 + $0x58] sm:$0xff] 0.0
          %315 = vst [vmem:[#allocation2 + $0x60] sm:$0xff] 0.0
          %316 = vst [vmem:[#allocation2 + $0x68] sm:$0xff] 0.0
          %317 = vst [vmem:[#allocation2 + $0x70] sm:$0xff] 0.0
          %318 = vst [vmem:[#allocation2 + $0x78] sm:$0xff] 0.0
          %319 = vst [vmem:[#allocation2 + $0x80] sm:$0xff] 0.0
          %320 = vst [vmem:[#allocation2 + $0x88] sm:$0xff] 0.0
          %321 = vst [vmem:[#allocation2 + $0x90] sm:$0xff] 0.0
          %322 = vst [vmem:[#allocation2 + $0x98] sm:$0xff] 0.0
          %323 = vst [vmem:[#allocation2 + $0xa0] sm:$0xff] 0.0
          %324 = vst [vmem:[#allocation2 + $0xa8] sm:$0xff] 0.0
          %325 = vst [vmem:[#allocation2 + $0xb0] sm:$0xff] 0.0
          %326 = vst [vmem:[#allocation2 + $0xb8] sm:$0xff] 0.0
          %327 = vst [vmem:[#allocation2 + $0xc0] sm:$0xff] 0.0
          %328 = vst [vmem:[#allocation2 + $0xc8] sm:$0xff] 0.0
          %329 = vst [vmem:[#allocation2 + $0xd0] sm:$0xff] 0.0
          %330 = vst [vmem:[#allocation2 + $0xd8] sm:$0xff] 0.0
          %331 = vst [vmem:[#allocation2 + $0xe0] sm:$0xff] 0.0
          %332 = vst [vmem:[#allocation2 + $0xe8] sm:$0xff] 0.0
          %333 = vst [vmem:[#allocation2 + $0xf0] sm:$0xff] 0.0
          %334 = vst [vmem:[#allocation2 + $0xf8] sm:$0xff] 0.0
        $region56: #{tpu_custom_call.1} parent=35 // pred_fallthru
          _
        %v335 = vld [vmem:[#allocation2] sm:$0xff]
        %v336 = vld [vmem:[#allocation2 + $0x8] sm:$0xff]
        %v337 = vld [vmem:[#allocation2 + $0x10] sm:$0xff]
        %v338 = vld [vmem:[#allocation2 + $0x18] sm:$0xff]
        %v339 = vld [vmem:[#allocation2 + $0x20] sm:$0xff]
        %v340 = vld [vmem:[#allocation2 + $0x28] sm:$0xff]
        %v341 = vld [vmem:[#allocation2 + $0x30] sm:$0xff]
        %v342 = vld [vmem:[#allocation2 + $0x38] sm:$0xff]
        %v343 = vld [vmem:[#allocation2 + $0x40] sm:$0xff]
        %v344 = vld [vmem:[#allocation2 + $0x48] sm:$0xff]
        %v345 = vld [vmem:[#allocation2 + $0x50] sm:$0xff]
        %v346 = vld [vmem:[#allocation2 + $0x58] sm:$0xff]
        %v347 = vld [vmem:[#allocation2 + $0x60] sm:$0xff]
        %v348 = vld [vmem:[#allocation2 + $0x68] sm:$0xff]
        %v349 = vld [vmem:[#allocation2 + $0x70] sm:$0xff]
        %v350 = vld [vmem:[#allocation2 + $0x78] sm:$0xff]
        %v351 = vld [vmem:[#allocation2 + $0x80] sm:$0xff]
        %v352 = vld [vmem:[#allocation2 + $0x88] sm:$0xff]
        %v353 = vld [vmem:[#allocation2 + $0x90] sm:$0xff]
        %v354 = vld [vmem:[#allocation2 + $0x98] sm:$0xff]
        %v355 = vld [vmem:[#allocation2 + $0xa0] sm:$0xff]
        %v356 = vld [vmem:[#allocation2 + $0xa8] sm:$0xff]
        %v357 = vld [vmem:[#allocation2 + $0xb0] sm:$0xff]
        %v358 = vld [vmem:[#allocation2 + $0xb8] sm:$0xff]
        %v359 = vld [vmem:[#allocation2 + $0xc0] sm:$0xff]
        %v360 = vld [vmem:[#allocation2 + $0xc8] sm:$0xff]
        %v361 = vld [vmem:[#allocation2 + $0xd0] sm:$0xff]
        %v362 = vld [vmem:[#allocation2 + $0xd8] sm:$0xff]
        %v363 = vld [vmem:[#allocation2 + $0xe0] sm:$0xff]
        %v364 = vld [vmem:[#allocation2 + $0xe8] sm:$0xff]
        %v365 = vld [vmem:[#allocation2 + $0xf0] sm:$0xff]
        %v366 = vld [vmem:[#allocation2 + $0xf8] sm:$0xff]
        %v367 = vld [vmem:[%s252] sm:$0xff]
        %v368 = vld [vmem:[%s252 + $0x8] sm:$0xff]
        %v369 = vld [vmem:[%s252 + $0x10] sm:$0xff]
        %v370 = vld [vmem:[%s252 + $0x18] sm:$0xf]
        %v371 = vld [vmem:[%s252 + $0x1c] sm:$0xff]
        %v372 = vld [vmem:[%s252 + $0x24] sm:$0xff]
        %v373 = vld [vmem:[%s252 + $0x2c] sm:$0xff]
        %v374 = vld [vmem:[%s252 + $0x34] sm:$0xf]
        %v375 = vld [vmem:[%s252 + $0x38] sm:$0xff]
        %v376 = vld [vmem:[%s252 + $0x40] sm:$0xff]
        %v377 = vld [vmem:[%s252 + $0x48] sm:$0xff]
        %v378 = vld [vmem:[%s252 + $0x50] sm:$0xf]
        %v379 = vld [vmem:[%s252 + $0x54] sm:$0xff]
        %v380 = vld [vmem:[%s252 + $0x5c] sm:$0xff]
        %v381 = vld [vmem:[%s252 + $0x64] sm:$0xff]
        %v382 = vld [vmem:[%s252 + $0x6c] sm:$0xf]
        %v383 = vld [vmem:[%s252 + $0x70] sm:$0xff]
        %v384 = vld [vmem:[%s252 + $0x78] sm:$0xff]
        %v385 = vld [vmem:[%s252 + $0x80] sm:$0xff]
        %v386 = vld [vmem:[%s252 + $0x88] sm:$0xf]
        %v387 = vld [vmem:[%s252 + $0x8c] sm:$0xff]
        %v388 = vld [vmem:[%s252 + $0x94] sm:$0xff]
        %v389 = vld [vmem:[%s252 + $0x9c] sm:$0xff]
        %v390 = vld [vmem:[%s252 + $0xa4] sm:$0xf]
        %v391 = vld [vmem:[%s252 + $0xa8] sm:$0xff]
        %v392 = vld [vmem:[%s252 + $0xb0] sm:$0xff]
        %v393 = vld [vmem:[%s252 + $0xb8] sm:$0xff]
        %v394 = vld [vmem:[%s252 + $0xc0] sm:$0xf]
        %v395 = vld [vmem:[%s252 + $0xc4] sm:$0xff]
        %v396 = vld [vmem:[%s252 + $0xcc] sm:$0xff]
        %v397 = vld [vmem:[%s252 + $0xd4] sm:$0xff]
        %v398 = vld [vmem:[%s252 + $0xdc] sm:$0xf]
        %v399 = vld [vmem:[%s252 + $0xe0] sm:$0xff]
        %v400 = vld [vmem:[%s252 + $0xe8] sm:$0xff]
        %v401 = vld [vmem:[%s252 + $0xf0] sm:$0xff]
        %v402 = vld [vmem:[%s252 + $0xf8] sm:$0xf]
        %v403 = vld [vmem:[%s252 + $0xfc] sm:$0xff]
        %v404 = vld [vmem:[%s252 + $0x104] sm:$0xff]
        %v405 = vld [vmem:[%s252 + $0x10c] sm:$0xff]
        %v406 = vld [vmem:[%s252 + $0x114] sm:$0xf]
        %v407 = vld [vmem:[%s252 + $0x118] sm:$0xff]
        %v408 = vld [vmem:[%s252 + $0x120] sm:$0xff]
        %v409 = vld [vmem:[%s252 + $0x128] sm:$0xff]
        %v410 = vld [vmem:[%s252 + $0x130] sm:$0xf]
        %v411 = vld [vmem:[%s252 + $0x134] sm:$0xff]
        %v412 = vld [vmem:[%s252 + $0x13c] sm:$0xff]
        %v413 = vld [vmem:[%s252 + $0x144] sm:$0xff]
        %v414 = vld [vmem:[%s252 + $0x14c] sm:$0xf]
        %v415 = vld [vmem:[%s252 + $0x150] sm:$0xff]
        %v416 = vld [vmem:[%s252 + $0x158] sm:$0xff]
        %v417 = vld [vmem:[%s252 + $0x160] sm:$0xff]
        %v418 = vld [vmem:[%s252 + $0x168] sm:$0xf]
        %v419 = vld [vmem:[%s252 + $0x16c] sm:$0xff]
        %v420 = vld [vmem:[%s252 + $0x174] sm:$0xff]
        %v421 = vld [vmem:[%s252 + $0x17c] sm:$0xff]
        %v422 = vld [vmem:[%s252 + $0x184] sm:$0xf]
        %v423 = vld [vmem:[%s252 + $0x188] sm:$0xff]
        %v424 = vld [vmem:[%s252 + $0x190] sm:$0xff]
        %v425 = vld [vmem:[%s252 + $0x198] sm:$0xff]
        %v426 = vld [vmem:[%s252 + $0x1a0] sm:$0xf]
        %v427 = vld [vmem:[%s252 + $0x1a4] sm:$0xff]
        %v428 = vld [vmem:[%s252 + $0x1ac] sm:$0xff]
        %v429 = vld [vmem:[%s252 + $0x1b4] sm:$0xff]
        %v430 = vld [vmem:[%s252 + $0x1bc] sm:$0xf]
        %v431 = vld [vmem:[%s261] sm:$0xff]
        %v432 = vld [vmem:[%s261 + $0x8] sm:$0xff]
        %v433 = vld [vmem:[%s261 + $0x10] sm:$0xff]
        %v434 = vld [vmem:[%s261 + $0x18] sm:$0xff]
        %v435 = vld [vmem:[%s261 + $0x20] sm:$0xff]
        %v436 = vld [vmem:[%s261 + $0x28] sm:$0xff]
        %v437 = vld [vmem:[%s261 + $0x30] sm:$0xff]
        %v438 = vld [vmem:[%s261 + $0x38] sm:$0xff]
        %v439 = vld [vmem:[%s261 + $0x40] sm:$0xff]
        %v440 = vld [vmem:[%s261 + $0x48] sm:$0xff]
        %v441 = vld [vmem:[%s261 + $0x50] sm:$0xff]
        %v442 = vld [vmem:[%s261 + $0x58] sm:$0xff]
        %v443 = vld [vmem:[%s261 + $0x60] sm:$0xff]
        %v444 = vld [vmem:[%s261 + $0x68] sm:$0xff]
        %v445 = vld [vmem:[%s261 + $0x70] sm:$0xff]
        %v446 = vld [vmem:[%s261 + $0x78] sm:$0xff]
        %v447 = vld [vmem:[%s261 + $0x80] sm:$0xff]
        %v448 = vld [vmem:[%s261 + $0x88] sm:$0xff]
        %v449 = vld [vmem:[%s261 + $0x90] sm:$0xff]
        %v450 = vld [vmem:[%s261 + $0x98] sm:$0xff]
        %v451 = vld [vmem:[%s261 + $0xa0] sm:$0xff]
        %v452 = vld [vmem:[%s261 + $0xa8] sm:$0xff]
        %v453 = vld [vmem:[%s261 + $0xb0] sm:$0xff]
        %v454 = vld [vmem:[%s261 + $0xb8] sm:$0xff]
        %v455 = vld [vmem:[%s261 + $0xc0] sm:$0xff]
        %v456 = vld [vmem:[%s261 + $0xc8] sm:$0xff]
        %v457 = vld [vmem:[%s261 + $0xd0] sm:$0xff]
        %v458 = vld [vmem:[%s261 + $0xd8] sm:$0xff]
        %v459 = vld [vmem:[%s261 + $0xe0] sm:$0xff]
        %v460 = vld [vmem:[%s261 + $0xe8] sm:$0xff]
        %v461 = vld [vmem:[%s261 + $0xf0] sm:$0xff]
        %v462 = vld [vmem:[%s261 + $0xf8] sm:$0xff]
        %v463 = vld [vmem:[%s261 + $0x100] sm:$0xff]
        %v464 = vld [vmem:[%s261 + $0x108] sm:$0xff]
        %v465 = vld [vmem:[%s261 + $0x110] sm:$0xff]
        %v466 = vld [vmem:[%s261 + $0x118] sm:$0xff]
        %v467 = vld [vmem:[%s261 + $0x120] sm:$0xff]
        %v468 = vld [vmem:[%s261 + $0x128] sm:$0xff]
        %v469 = vld [vmem:[%s261 + $0x130] sm:$0xff]
        %v470 = vld [vmem:[%s261 + $0x138] sm:$0xff]
        %v471 = vld [vmem:[%s261 + $0x140] sm:$0xff]
        %v472 = vld [vmem:[%s261 + $0x148] sm:$0xff]
        %v473 = vld [vmem:[%s261 + $0x150] sm:$0xff]
        %v474 = vld [vmem:[%s261 + $0x158] sm:$0xff]
        %v475 = vld [vmem:[%s261 + $0x160] sm:$0xff]
        %v476 = vld [vmem:[%s261 + $0x168] sm:$0xff]
        %v477 = vld [vmem:[%s261 + $0x170] sm:$0xff]
        %v478 = vld [vmem:[%s261 + $0x178] sm:$0xff]
        %v479 = vld [vmem:[%s261 + $0x180] sm:$0xff]
        %v480 = vld [vmem:[%s261 + $0x188] sm:$0xff]
        %v481 = vld [vmem:[%s261 + $0x190] sm:$0xff]
        %v482 = vld [vmem:[%s261 + $0x198] sm:$0xff]
        %v483 = vld [vmem:[%s261 + $0x1a0] sm:$0xff]
        %v484 = vld [vmem:[%s261 + $0x1a8] sm:$0xff]
        %v485 = vld [vmem:[%s261 + $0x1b0] sm:$0xff]
        %v486 = vld [vmem:[%s261 + $0x1b8] sm:$0xff]
        %v487 = vld [vmem:[%s261 + $0x1c0] sm:$0xff]
        %v488 = vld [vmem:[%s261 + $0x1c8] sm:$0xff]
        %v489 = vld [vmem:[%s261 + $0x1d0] sm:$0xff]
        %v490 = vld [vmem:[%s261 + $0x1d8] sm:$0xff]
        %v491 = vld [vmem:[%s261 + $0x1e0] sm:$0xff]
        %v492 = vld [vmem:[%s261 + $0x1e8] sm:$0xff]
        %v493 = vld [vmem:[%s261 + $0x1f0] sm:$0xff]
        %v494 = vld [vmem:[%s261 + $0x1f8] sm:$0xff]
        %v495 = vld [vmem:[%s261 + $0x200] sm:$0xff]
        %v496 = vld [vmem:[%s261 + $0x208] sm:$0xff]
        %v497 = vld [vmem:[%s261 + $0x210] sm:$0xff]
        %v498 = vld [vmem:[%s261 + $0x218] sm:$0xff]
        %v499 = vld [vmem:[%s261 + $0x220] sm:$0xff]
        %v500 = vld [vmem:[%s261 + $0x228] sm:$0xff]
        %v501 = vld [vmem:[%s261 + $0x230] sm:$0xff]
        %v502 = vld [vmem:[%s261 + $0x238] sm:$0xff]
        %v503 = vld [vmem:[%s261 + $0x240] sm:$0xff]
        %v504 = vld [vmem:[%s261 + $0x248] sm:$0xff]
        %v505 = vld [vmem:[%s261 + $0x250] sm:$0xff]
        %v506 = vld [vmem:[%s261 + $0x258] sm:$0xff]
        %v507 = vld [vmem:[%s261 + $0x260] sm:$0xff]
        %v508 = vld [vmem:[%s261 + $0x268] sm:$0xff]
        %v509 = vld [vmem:[%s261 + $0x270] sm:$0xff]
        %v510 = vld [vmem:[%s261 + $0x278] sm:$0xff]
        %v511 = vld [vmem:[%s261 + $0x280] sm:$0xff]
        %v512 = vld [vmem:[%s261 + $0x288] sm:$0xff]
        %v513 = vld [vmem:[%s261 + $0x290] sm:$0xff]
        %v514 = vld [vmem:[%s261 + $0x298] sm:$0xff]
        %v515 = vld [vmem:[%s261 + $0x2a0] sm:$0xff]
        %v516 = vld [vmem:[%s261 + $0x2a8] sm:$0xff]
        %v517 = vld [vmem:[%s261 + $0x2b0] sm:$0xff]
        %v518 = vld [vmem:[%s261 + $0x2b8] sm:$0xff]
        %v519 = vld [vmem:[%s261 + $0x2c0] sm:$0xff]
        %v520 = vld [vmem:[%s261 + $0x2c8] sm:$0xff]
        %v521 = vld [vmem:[%s261 + $0x2d0] sm:$0xff]
        %v522 = vld [vmem:[%s261 + $0x2d8] sm:$0xff]
        %v523 = vld [vmem:[%s261 + $0x2e0] sm:$0xff]
        %v524 = vld [vmem:[%s261 + $0x2e8] sm:$0xff]
        %v525 = vld [vmem:[%s261 + $0x2f0] sm:$0xff]
        %v526 = vld [vmem:[%s261 + $0x2f8] sm:$0xff]
        %v527 = vld [vmem:[%s261 + $0x300] sm:$0xff]
        %v528 = vld [vmem:[%s261 + $0x308] sm:$0xff]
        %v529 = vld [vmem:[%s261 + $0x310] sm:$0xff]
        %v530 = vld [vmem:[%s261 + $0x318] sm:$0xff]
        %v531 = vld [vmem:[%s261 + $0x320] sm:$0xff]
        %v532 = vld [vmem:[%s261 + $0x328] sm:$0xff]
        %v533 = vld [vmem:[%s261 + $0x330] sm:$0xff]
        %v534 = vld [vmem:[%s261 + $0x338] sm:$0xff]
        %v535 = vld [vmem:[%s261 + $0x340] sm:$0xff]
        %v536 = vld [vmem:[%s261 + $0x348] sm:$0xff]
        %v537 = vld [vmem:[%s261 + $0x350] sm:$0xff]
        %v538 = vld [vmem:[%s261 + $0x358] sm:$0xff]
        %v539 = vld [vmem:[%s261 + $0x360] sm:$0xff]
        %v540 = vld [vmem:[%s261 + $0x368] sm:$0xff]
        %v541 = vld [vmem:[%s261 + $0x370] sm:$0xff]
        %v542 = vld [vmem:[%s261 + $0x378] sm:$0xff]
        %v607 = vunpack.c.l.b16 %v367
        %v608 = vunpack.c.h.b16 %v367
        %v609 = vunpack.c.l.b16 %v368
        %v610 = vunpack.c.h.b16 %v368
        %v611 = vunpack.c.l.b16 %v369
        %v612 = vunpack.c.h.b16 %v369
        %v613 = vunpack.c.l.b16 %v370
        %v614 = vunpack.c.l.b16 %v371
        %v615 = vunpack.c.h.b16 %v371
        %v616 = vunpack.c.l.b16 %v372
        %v617 = vunpack.c.h.b16 %v372
        %v618 = vunpack.c.l.b16 %v373
        %v619 = vunpack.c.h.b16 %v373
        %v620 = vunpack.c.l.b16 %v374
        %v621 = vunpack.c.l.b16 %v375
        %v622 = vunpack.c.h.b16 %v375
        %v623 = vunpack.c.l.b16 %v376
        %v624 = vunpack.c.h.b16 %v376
        %v625 = vunpack.c.l.b16 %v377
        %v626 = vunpack.c.h.b16 %v377
        %v627 = vunpack.c.l.b16 %v378
        %v628 = vunpack.c.l.b16 %v379
        %v629 = vunpack.c.h.b16 %v379
        %v630 = vunpack.c.l.b16 %v380
        %v631 = vunpack.c.h.b16 %v380
        %v632 = vunpack.c.l.b16 %v381
        %v633 = vunpack.c.h.b16 %v381
        %v634 = vunpack.c.l.b16 %v382
        %v635 = vunpack.c.l.b16 %v383
        %v636 = vunpack.c.h.b16 %v383
        %v637 = vunpack.c.l.b16 %v384
        %v638 = vunpack.c.h.b16 %v384
        %v639 = vunpack.c.l.b16 %v385
        %v640 = vunpack.c.h.b16 %v385
        %v641 = vunpack.c.l.b16 %v386
        %v642 = vunpack.c.l.b16 %v387
        %v643 = vunpack.c.h.b16 %v387
        %v644 = vunpack.c.l.b16 %v388
        %v645 = vunpack.c.h.b16 %v388
        %v646 = vunpack.c.l.b16 %v389
        %v647 = vunpack.c.h.b16 %v389
        %v648 = vunpack.c.l.b16 %v390
        %v649 = vunpack.c.l.b16 %v391
        %v650 = vunpack.c.h.b16 %v391
        %v651 = vunpack.c.l.b16 %v392
        %v652 = vunpack.c.h.b16 %v392
        %v653 = vunpack.c.l.b16 %v393
        %v654 = vunpack.c.h.b16 %v393
        %v655 = vunpack.c.l.b16 %v394
        %v656 = vunpack.c.l.b16 %v395
        %v657 = vunpack.c.h.b16 %v395
        %v658 = vunpack.c.l.b16 %v396
        %v659 = vunpack.c.h.b16 %v396
        %v660 = vunpack.c.l.b16 %v397
        %v661 = vunpack.c.h.b16 %v397
        %v662 = vunpack.c.l.b16 %v398
        %v663 = vunpack.c.l.b16 %v399
        %v664 = vunpack.c.h.b16 %v399
        %v665 = vunpack.c.l.b16 %v400
        %v666 = vunpack.c.h.b16 %v400
        %v667 = vunpack.c.l.b16 %v401
        %v668 = vunpack.c.h.b16 %v401
        %v669 = vunpack.c.l.b16 %v402
        %v670 = vunpack.c.l.b16 %v403
        %v671 = vunpack.c.h.b16 %v403
        %v672 = vunpack.c.l.b16 %v404
        %v673 = vunpack.c.h.b16 %v404
        %v674 = vunpack.c.l.b16 %v405
        %v675 = vunpack.c.h.b16 %v405
        %v676 = vunpack.c.l.b16 %v406
        %v677 = vunpack.c.l.b16 %v407
        %v678 = vunpack.c.h.b16 %v407
        %v679 = vunpack.c.l.b16 %v408
        %v680 = vunpack.c.h.b16 %v408
        %v681 = vunpack.c.l.b16 %v409
        %v682 = vunpack.c.h.b16 %v409
        %v683 = vunpack.c.l.b16 %v410
        %v684 = vunpack.c.l.b16 %v411
        %v685 = vunpack.c.h.b16 %v411
        %v686 = vunpack.c.l.b16 %v412
        %v687 = vunpack.c.h.b16 %v412
        %v688 = vunpack.c.l.b16 %v413
        %v689 = vunpack.c.h.b16 %v413
        %v690 = vunpack.c.l.b16 %v414
        %v691 = vunpack.c.l.b16 %v415
        %v692 = vunpack.c.h.b16 %v415
        %v693 = vunpack.c.l.b16 %v416
        %v694 = vunpack.c.h.b16 %v416
        %v695 = vunpack.c.l.b16 %v417
        %v696 = vunpack.c.h.b16 %v417
        %v697 = vunpack.c.l.b16 %v418
        %v698 = vunpack.c.l.b16 %v419
        %v699 = vunpack.c.h.b16 %v419
        %v700 = vunpack.c.l.b16 %v420
        %v701 = vunpack.c.h.b16 %v420
        %v702 = vunpack.c.l.b16 %v421
        %v703 = vunpack.c.h.b16 %v421
        %v704 = vunpack.c.l.b16 %v422
        %v705 = vunpack.c.l.b16 %v423
        %v706 = vunpack.c.h.b16 %v423
        %v707 = vunpack.c.l.b16 %v424
        %v708 = vunpack.c.h.b16 %v424
        %v709 = vunpack.c.l.b16 %v425
        %v710 = vunpack.c.h.b16 %v425
        %v711 = vunpack.c.l.b16 %v426
        %v712 = vunpack.c.l.b16 %v427
        %v713 = vunpack.c.h.b16 %v427
        %v714 = vunpack.c.l.b16 %v428
        %v715 = vunpack.c.h.b16 %v428
        %v716 = vunpack.c.l.b16 %v429
        %v717 = vunpack.c.h.b16 %v429
        %v718 = vunpack.c.l.b16 %v430
        %v719 = vpack.c.b16 %v614, %v607
        %v720 = vpack.c.b16 %v615, %v608
        %v721 = vpack.c.b16 %v616, %v609
        %v722 = vpack.c.b16 %v617, %v610
        %v723 = vpack.c.b16 %v618, %v611
        %v724 = vpack.c.b16 %v619, %v612
        %v725 = vpack.c.b16 %v620, %v613
        %v726 = vpack.c.b16 %v628, %v621
        %v727 = vpack.c.b16 %v629, %v622
        %v728 = vpack.c.b16 %v630, %v623
        %v729 = vpack.c.b16 %v631, %v624
        %v730 = vpack.c.b16 %v632, %v625
        %v731 = vpack.c.b16 %v633, %v626
        %v732 = vpack.c.b16 %v634, %v627
        %v733 = vpack.c.b16 %v642, %v635
        %v734 = vpack.c.b16 %v643, %v636
        %v735 = vpack.c.b16 %v644, %v637
        %v736 = vpack.c.b16 %v645, %v638
        %v737 = vpack.c.b16 %v646, %v639
        %v738 = vpack.c.b16 %v647, %v640
        %v739 = vpack.c.b16 %v648, %v641
        %v740 = vpack.c.b16 %v656, %v649
        %v741 = vpack.c.b16 %v657, %v650
        %v742 = vpack.c.b16 %v658, %v651
        %v743 = vpack.c.b16 %v659, %v652
        %v744 = vpack.c.b16 %v660, %v653
        %v745 = vpack.c.b16 %v661, %v654
        %v746 = vpack.c.b16 %v662, %v655
        %v747 = vpack.c.b16 %v670, %v663
        %v748 = vpack.c.b16 %v671, %v664
        %v749 = vpack.c.b16 %v672, %v665
        %v750 = vpack.c.b16 %v673, %v666
        %v751 = vpack.c.b16 %v674, %v667
        %v752 = vpack.c.b16 %v675, %v668
        %v753 = vpack.c.b16 %v676, %v669
        %v754 = vpack.c.b16 %v684, %v677
        %v755 = vpack.c.b16 %v685, %v678
        %v756 = vpack.c.b16 %v686, %v679
        %v757 = vpack.c.b16 %v687, %v680
        %v758 = vpack.c.b16 %v688, %v681
        %v759 = vpack.c.b16 %v689, %v682
        %v760 = vpack.c.b16 %v690, %v683
        %v761 = vpack.c.b16 %v698, %v691
        %v762 = vpack.c.b16 %v699, %v692
        %v763 = vpack.c.b16 %v700, %v693
        %v764 = vpack.c.b16 %v701, %v694
        %v765 = vpack.c.b16 %v702, %v695
        %v766 = vpack.c.b16 %v703, %v696
        %v767 = vpack.c.b16 %v704, %v697
        %v768 = vpack.c.b16 %v712, %v705
        %v769 = vpack.c.b16 %v713, %v706
        %v770 = vpack.c.b16 %v714, %v707
        %v771 = vpack.c.b16 %v715, %v708
        %v772 = vpack.c.b16 %v716, %v709
        %v773 = vpack.c.b16 %v717, %v710
        %v774 = vpack.c.b16 %v718, %v711
        %v943 = vunpack.c.l.b16 %v431
        %v944 = vunpack.c.h.b16 %v431
        %v945 = vunpack.c.l.b16 %v432
        %v946 = vunpack.c.h.b16 %v432
        %v947 = vunpack.c.l.b16 %v433
        %v948 = vunpack.c.h.b16 %v433
        %v949 = vunpack.c.l.b16 %v434
        %v950 = vunpack.c.h.b16 %v434
        %v951 = vunpack.c.l.b16 %v435
        %v952 = vunpack.c.h.b16 %v435
        %v953 = vunpack.c.l.b16 %v436
        %v954 = vunpack.c.h.b16 %v436
        %v955 = vunpack.c.l.b16 %v437
        %v956 = vunpack.c.h.b16 %v437
        %v957 = vunpack.c.l.b16 %v438
        %v958 = vunpack.c.h.b16 %v438
        %v959 = vunpack.c.l.b16 %v439
        %v960 = vunpack.c.h.b16 %v439
        %v961 = vunpack.c.l.b16 %v440
        %v962 = vunpack.c.h.b16 %v440
        %v963 = vunpack.c.l.b16 %v441
        %v964 = vunpack.c.h.b16 %v441
        %v965 = vunpack.c.l.b16 %v442
        %v966 = vunpack.c.h.b16 %v442
        %v967 = vunpack.c.l.b16 %v443
        %v968 = vunpack.c.h.b16 %v443
        %v969 = vunpack.c.l.b16 %v444
        %v970 = vunpack.c.h.b16 %v444
        %v971 = vunpack.c.l.b16 %v445
        %v972 = vunpack.c.h.b16 %v445
        %v973 = vunpack.c.l.b16 %v446
        %v974 = vunpack.c.h.b16 %v446
        %v975 = vunpack.c.l.b16 %v447
        %v976 = vunpack.c.h.b16 %v447
        %v977 = vunpack.c.l.b16 %v448
        %v978 = vunpack.c.h.b16 %v448
        %v979 = vunpack.c.l.b16 %v449
        %v980 = vunpack.c.h.b16 %v449
        %v981 = vunpack.c.l.b16 %v450
        %v982 = vunpack.c.h.b16 %v450
        %v983 = vunpack.c.l.b16 %v451
        %v984 = vunpack.c.h.b16 %v451
        %v985 = vunpack.c.l.b16 %v452
        %v986 = vunpack.c.h.b16 %v452
        %v987 = vunpack.c.l.b16 %v453
        %v988 = vunpack.c.h.b16 %v453
        %v989 = vunpack.c.l.b16 %v454
        %v990 = vunpack.c.h.b16 %v454
        %v991 = vunpack.c.l.b16 %v455
        %v992 = vunpack.c.h.b16 %v455
        %v993 = vunpack.c.l.b16 %v456
        %v994 = vunpack.c.h.b16 %v456
        %v995 = vunpack.c.l.b16 %v457
        %v996 = vunpack.c.h.b16 %v457
        %v997 = vunpack.c.l.b16 %v458
        %v998 = vunpack.c.h.b16 %v458
        %v999 = vunpack.c.l.b16 %v459
        %v1000 = vunpack.c.h.b16 %v459
        %v1001 = vunpack.c.l.b16 %v460
        %v1002 = vunpack.c.h.b16 %v460
        %v1003 = vunpack.c.l.b16 %v461
        %v1004 = vunpack.c.h.b16 %v461
        %v1005 = vunpack.c.l.b16 %v462
        %v1006 = vunpack.c.h.b16 %v462
        %v1007 = vunpack.c.l.b16 %v463
        %v1008 = vunpack.c.h.b16 %v463
        %v1009 = vunpack.c.l.b16 %v464
        %v1010 = vunpack.c.h.b16 %v464
        %v1011 = vunpack.c.l.b16 %v465
        %v1012 = vunpack.c.h.b16 %v465
        %v1013 = vunpack.c.l.b16 %v466
        %v1014 = vunpack.c.h.b16 %v466
        %v1015 = vunpack.c.l.b16 %v467
        %v1016 = vunpack.c.h.b16 %v467
        %v1017 = vunpack.c.l.b16 %v468
        %v1018 = vunpack.c.h.b16 %v468
        %v1019 = vunpack.c.l.b16 %v469
        %v1020 = vunpack.c.h.b16 %v469
        %v1021 = vunpack.c.l.b16 %v470
        %v1022 = vunpack.c.h.b16 %v470
        %v1023 = vunpack.c.l.b16 %v471
        %v1024 = vunpack.c.h.b16 %v471
        %v1025 = vunpack.c.l.b16 %v472
        %v1026 = vunpack.c.h.b16 %v472
        %v1027 = vunpack.c.l.b16 %v473
        %v1028 = vunpack.c.h.b16 %v473
        %v1029 = vunpack.c.l.b16 %v474
        %v1030 = vunpack.c.h.b16 %v474
        %v1031 = vunpack.c.l.b16 %v475
        %v1032 = vunpack.c.h.b16 %v475
        %v1033 = vunpack.c.l.b16 %v476
        %v1034 = vunpack.c.h.b16 %v476
        %v1035 = vunpack.c.l.b16 %v477
        %v1036 = vunpack.c.h.b16 %v477
        %v1037 = vunpack.c.l.b16 %v478
        %v1038 = vunpack.c.h.b16 %v478
        %v1039 = vunpack.c.l.b16 %v479
        %v1040 = vunpack.c.h.b16 %v479
        %v1041 = vunpack.c.l.b16 %v480
        %v1042 = vunpack.c.h.b16 %v480
        %v1043 = vunpack.c.l.b16 %v481
        %v1044 = vunpack.c.h.b16 %v481
        %v1045 = vunpack.c.l.b16 %v482
        %v1046 = vunpack.c.h.b16 %v482
        %v1047 = vunpack.c.l.b16 %v483
        %v1048 = vunpack.c.h.b16 %v483
        %v1049 = vunpack.c.l.b16 %v484
        %v1050 = vunpack.c.h.b16 %v484
        %v1051 = vunpack.c.l.b16 %v485
        %v1052 = vunpack.c.h.b16 %v485
        %v1053 = vunpack.c.l.b16 %v486
        %v1054 = vunpack.c.h.b16 %v486
        %v1055 = vunpack.c.l.b16 %v487
        %v1056 = vunpack.c.h.b16 %v487
        %v1057 = vunpack.c.l.b16 %v488
        %v1058 = vunpack.c.h.b16 %v488
        %v1059 = vunpack.c.l.b16 %v489
        %v1060 = vunpack.c.h.b16 %v489
        %v1061 = vunpack.c.l.b16 %v490
        %v1062 = vunpack.c.h.b16 %v490
        %v1063 = vunpack.c.l.b16 %v491
        %v1064 = vunpack.c.h.b16 %v491
        %v1065 = vunpack.c.l.b16 %v492
        %v1066 = vunpack.c.h.b16 %v492
        %v1067 = vunpack.c.l.b16 %v493
        %v1068 = vunpack.c.h.b16 %v493
        %v1069 = vunpack.c.l.b16 %v494
        %v1070 = vunpack.c.h.b16 %v494
        %v1071 = vunpack.c.l.b16 %v495
        %v1072 = vunpack.c.h.b16 %v495
        %v1073 = vunpack.c.l.b16 %v496
        %v1074 = vunpack.c.h.b16 %v496
        %v1075 = vunpack.c.l.b16 %v497
        %v1076 = vunpack.c.h.b16 %v497
        %v1077 = vunpack.c.l.b16 %v498
        %v1078 = vunpack.c.h.b16 %v498
        %v1079 = vunpack.c.l.b16 %v499
        %v1080 = vunpack.c.h.b16 %v499
        %v1081 = vunpack.c.l.b16 %v500
        %v1082 = vunpack.c.h.b16 %v500
        %v1083 = vunpack.c.l.b16 %v501
        %v1084 = vunpack.c.h.b16 %v501
        %v1085 = vunpack.c.l.b16 %v502
        %v1086 = vunpack.c.h.b16 %v502
        %v1087 = vunpack.c.l.b16 %v503
        %v1088 = vunpack.c.h.b16 %v503
        %v1089 = vunpack.c.l.b16 %v504
        %v1090 = vunpack.c.h.b16 %v504
        %v1091 = vunpack.c.l.b16 %v505
        %v1092 = vunpack.c.h.b16 %v505
        %v1093 = vunpack.c.l.b16 %v506
        %v1094 = vunpack.c.h.b16 %v506
        %v1095 = vunpack.c.l.b16 %v507
        %v1096 = vunpack.c.h.b16 %v507
        %v1097 = vunpack.c.l.b16 %v508
        %v1098 = vunpack.c.h.b16 %v508
        %v1099 = vunpack.c.l.b16 %v509
        %v1100 = vunpack.c.h.b16 %v509
        %v1101 = vunpack.c.l.b16 %v510
        %v1102 = vunpack.c.h.b16 %v510
        %v1103 = vunpack.c.l.b16 %v511
        %v1104 = vunpack.c.h.b16 %v511
        %v1105 = vunpack.c.l.b16 %v512
        %v1106 = vunpack.c.h.b16 %v512
        %v1107 = vunpack.c.l.b16 %v513
        %v1108 = vunpack.c.h.b16 %v513
        %v1109 = vunpack.c.l.b16 %v514
        %v1110 = vunpack.c.h.b16 %v514
        %v1111 = vunpack.c.l.b16 %v515
        %v1112 = vunpack.c.h.b16 %v515
        %v1113 = vunpack.c.l.b16 %v516
        %v1114 = vunpack.c.h.b16 %v516
        %v1115 = vunpack.c.l.b16 %v517
        %v1116 = vunpack.c.h.b16 %v517
        %v1117 = vunpack.c.l.b16 %v518
        %v1118 = vunpack.c.h.b16 %v518
        %v1119 = vunpack.c.l.b16 %v519
        %v1120 = vunpack.c.h.b16 %v519
        %v1121 = vunpack.c.l.b16 %v520
        %v1122 = vunpack.c.h.b16 %v520
        %v1123 = vunpack.c.l.b16 %v521
        %v1124 = vunpack.c.h.b16 %v521
        %v1125 = vunpack.c.l.b16 %v522
        %v1126 = vunpack.c.h.b16 %v522
        %v1127 = vunpack.c.l.b16 %v523
        %v1128 = vunpack.c.h.b16 %v523
        %v1129 = vunpack.c.l.b16 %v524
        %v1130 = vunpack.c.h.b16 %v524
        %v1131 = vunpack.c.l.b16 %v525
        %v1132 = vunpack.c.h.b16 %v525
        %v1133 = vunpack.c.l.b16 %v526
        %v1134 = vunpack.c.h.b16 %v526
        %v1135 = vunpack.c.l.b16 %v527
        %v1136 = vunpack.c.h.b16 %v527
        %v1137 = vunpack.c.l.b16 %v528
        %v1138 = vunpack.c.h.b16 %v528
        %v1139 = vunpack.c.l.b16 %v529
        %v1140 = vunpack.c.h.b16 %v529
        %v1141 = vunpack.c.l.b16 %v530
        %v1142 = vunpack.c.h.b16 %v530
        %v1143 = vunpack.c.l.b16 %v531
        %v1144 = vunpack.c.h.b16 %v531
        %v1145 = vunpack.c.l.b16 %v532
        %v1146 = vunpack.c.h.b16 %v532
        %v1147 = vunpack.c.l.b16 %v533
        %v1148 = vunpack.c.h.b16 %v533
        %v1149 = vunpack.c.l.b16 %v534
        %v1150 = vunpack.c.h.b16 %v534
        %v1151 = vunpack.c.l.b16 %v535
        %v1152 = vunpack.c.h.b16 %v535
        %v1153 = vunpack.c.l.b16 %v536
        %v1154 = vunpack.c.h.b16 %v536
        %v1155 = vunpack.c.l.b16 %v537
        %v1156 = vunpack.c.h.b16 %v537
        %v1157 = vunpack.c.l.b16 %v538
        %v1158 = vunpack.c.h.b16 %v538
        %v1159 = vunpack.c.l.b16 %v539
        %v1160 = vunpack.c.h.b16 %v539
        %v1161 = vunpack.c.l.b16 %v540
        %v1162 = vunpack.c.h.b16 %v540
        %v1163 = vunpack.c.l.b16 %v541
        %v1164 = vunpack.c.h.b16 %v541
        %v1165 = vunpack.c.l.b16 %v542
        %v1166 = vunpack.c.h.b16 %v542
        %v1167 = vpack.c.b16 %v945, %v943
        %v1168 = vpack.c.b16 %v946, %v944
        %v1169 = vpack.c.b16 %v949, %v947
        %v1170 = vpack.c.b16 %v950, %v948
        %v1171 = vpack.c.b16 %v953, %v951
        %v1172 = vpack.c.b16 %v954, %v952
        %v1173 = vpack.c.b16 %v957, %v955
        %v1174 = vpack.c.b16 %v958, %v956
        %v1175 = vpack.c.b16 %v961, %v959
        %v1176 = vpack.c.b16 %v962, %v960
        %v1177 = vpack.c.b16 %v965, %v963
        %v1178 = vpack.c.b16 %v966, %v964
        %v1179 = vpack.c.b16 %v969, %v967
        %v1180 = vpack.c.b16 %v970, %v968
        %v1181 = vpack.c.b16 %v973, %v971
        %v1182 = vpack.c.b16 %v974, %v972
        %v1183 = vpack.c.b16 %v977, %v975
        %v1184 = vpack.c.b16 %v978, %v976
        %v1185 = vpack.c.b16 %v981, %v979
        %v1186 = vpack.c.b16 %v982, %v980
        %v1187 = vpack.c.b16 %v985, %v983
        %v1188 = vpack.c.b16 %v986, %v984
        %v1189 = vpack.c.b16 %v989, %v987
        %v1190 = vpack.c.b16 %v990, %v988
        %v1191 = vpack.c.b16 %v993, %v991
        %v1192 = vpack.c.b16 %v994, %v992
        %v1193 = vpack.c.b16 %v997, %v995
        %v1194 = vpack.c.b16 %v998, %v996
        %v1195 = vpack.c.b16 %v1001, %v999
        %v1196 = vpack.c.b16 %v1002, %v1000
        %v1197 = vpack.c.b16 %v1005, %v1003
        %v1198 = vpack.c.b16 %v1006, %v1004
        %v1199 = vpack.c.b16 %v1009, %v1007
        %v1200 = vpack.c.b16 %v1010, %v1008
        %v1201 = vpack.c.b16 %v1013, %v1011
        %v1202 = vpack.c.b16 %v1014, %v1012
        %v1203 = vpack.c.b16 %v1017, %v1015
        %v1204 = vpack.c.b16 %v1018, %v1016
        %v1205 = vpack.c.b16 %v1021, %v1019
        %v1206 = vpack.c.b16 %v1022, %v1020
        %v1207 = vpack.c.b16 %v1025, %v1023
        %v1208 = vpack.c.b16 %v1026, %v1024
        %v1209 = vpack.c.b16 %v1029, %v1027
        %v1210 = vpack.c.b16 %v1030, %v1028
        %v1211 = vpack.c.b16 %v1033, %v1031
        %v1212 = vpack.c.b16 %v1034, %v1032
        %v1213 = vpack.c.b16 %v1037, %v1035
        %v1214 = vpack.c.b16 %v1038, %v1036
        %v1215 = vpack.c.b16 %v1041, %v1039
        %v1216 = vpack.c.b16 %v1042, %v1040
        %v1217 = vpack.c.b16 %v1045, %v1043
        %v1218 = vpack.c.b16 %v1046, %v1044
        %v1219 = vpack.c.b16 %v1049, %v1047
        %v1220 = vpack.c.b16 %v1050, %v1048
        %v1221 = vpack.c.b16 %v1053, %v1051
        %v1222 = vpack.c.b16 %v1054, %v1052
        %v1223 = vpack.c.b16 %v1057, %v1055
        %v1224 = vpack.c.b16 %v1058, %v1056
        %v1225 = vpack.c.b16 %v1061, %v1059
        %v1226 = vpack.c.b16 %v1062, %v1060
        %v1227 = vpack.c.b16 %v1065, %v1063
        %v1228 = vpack.c.b16 %v1066, %v1064
        %v1229 = vpack.c.b16 %v1069, %v1067
        %v1230 = vpack.c.b16 %v1070, %v1068
        %v1231 = vpack.c.b16 %v1073, %v1071
        %v1232 = vpack.c.b16 %v1074, %v1072
        %v1233 = vpack.c.b16 %v1077, %v1075
        %v1234 = vpack.c.b16 %v1078, %v1076
        %v1235 = vpack.c.b16 %v1081, %v1079
        %v1236 = vpack.c.b16 %v1082, %v1080
        %v1237 = vpack.c.b16 %v1085, %v1083
        %v1238 = vpack.c.b16 %v1086, %v1084
        %v1239 = vpack.c.b16 %v1089, %v1087
        %v1240 = vpack.c.b16 %v1090, %v1088
        %v1241 = vpack.c.b16 %v1093, %v1091
        %v1242 = vpack.c.b16 %v1094, %v1092
        %v1243 = vpack.c.b16 %v1097, %v1095
        %v1244 = vpack.c.b16 %v1098, %v1096
        %v1245 = vpack.c.b16 %v1101, %v1099
        %v1246 = vpack.c.b16 %v1102, %v1100
        %v1247 = vpack.c.b16 %v1105, %v1103
        %v1248 = vpack.c.b16 %v1106, %v1104
        %v1249 = vpack.c.b16 %v1109, %v1107
        %v1250 = vpack.c.b16 %v1110, %v1108
        %v1251 = vpack.c.b16 %v1113, %v1111
        %v1252 = vpack.c.b16 %v1114, %v1112
        %v1253 = vpack.c.b16 %v1117, %v1115
        %v1254 = vpack.c.b16 %v1118, %v1116
        %v1255 = vpack.c.b16 %v1121, %v1119
        %v1256 = vpack.c.b16 %v1122, %v1120
        %v1257 = vpack.c.b16 %v1125, %v1123
        %v1258 = vpack.c.b16 %v1126, %v1124
        %v1259 = vpack.c.b16 %v1129, %v1127
        %v1260 = vpack.c.b16 %v1130, %v1128
        %v1261 = vpack.c.b16 %v1133, %v1131
        %v1262 = vpack.c.b16 %v1134, %v1132
        %v1263 = vpack.c.b16 %v1137, %v1135
        %v1264 = vpack.c.b16 %v1138, %v1136
        %v1265 = vpack.c.b16 %v1141, %v1139
        %v1266 = vpack.c.b16 %v1142, %v1140
        %v1267 = vpack.c.b16 %v1145, %v1143
        %v1268 = vpack.c.b16 %v1146, %v1144
        %v1269 = vpack.c.b16 %v1149, %v1147
        %v1270 = vpack.c.b16 %v1150, %v1148
        %v1271 = vpack.c.b16 %v1153, %v1151
        %v1272 = vpack.c.b16 %v1154, %v1152
        %v1273 = vpack.c.b16 %v1157, %v1155
        %v1274 = vpack.c.b16 %v1158, %v1156
        %v1275 = vpack.c.b16 %v1161, %v1159
        %v1276 = vpack.c.b16 %v1162, %v1160
        %v1277 = vpack.c.b16 %v1165, %v1163
        %v1278 = vpack.c.b16 %v1166, %v1164
        %1391 = vmatprep.subr.bf16.mxu0 %v1182
        %1392 = vmatpush1.bf16.msra.mxu0 %v1181
        %1393 = vmatprep.subr.bf16.mxu0 %v1180
        %1394 = vmatpush1.bf16.msra.mxu0 %v1179
        %1395 = vmatprep.subr.bf16.mxu0 %v1178
        %1396 = vmatpush1.bf16.msra.mxu0 %v1177
        %1397 = vmatprep.subr.bf16.mxu0 %v1176
        %1398 = vmatpush1.bf16.msra.mxu0 %v1175
        %1399 = vmatprep.subr.bf16.mxu0 %v1174
        %1400 = vmatpush1.bf16.msra.mxu0 %v1173
        %1401 = vmatprep.subr.bf16.mxu0 %v1172
        %1402 = vmatpush1.bf16.msra.mxu0 %v1171
        %1403 = vmatprep.subr.bf16.mxu0 %v1170
        %1404 = vmatpush1.bf16.msra.mxu0 %v1169
        %1405 = vmatprep.subr.bf16.mxu0 %v1168
        %1406 = vmatpush1.bf16.msra.mxu0 %v1167
        %1407 = vmatprep.subr.bf16.mxu0 %v1198
        %1408 = vmatpush2.bf16.msra.mxu0 %v1197
        %1409 = vmatprep.subr.bf16.mxu0 %v1196
        %1410 = vmatpush2.bf16.msra.mxu0 %v1195
        %1411 = vmatprep.subr.bf16.mxu0 %v1194
        %1412 = vmatpush2.bf16.msra.mxu0 %v1193
        %1413 = vmatprep.subr.bf16.mxu0 %v1192
        %1414 = vmatpush2.bf16.msra.mxu0 %v1191
        %1415 = vmatprep.subr.bf16.mxu0 %v1190
        %1416 = vmatpush2.bf16.msra.mxu0 %v1189
        %1417 = vmatprep.subr.bf16.mxu0 %v1188
        %1418 = vmatpush2.bf16.msra.mxu0 %v1187
        %1419 = vmatprep.subr.bf16.mxu0 %v1186
        %1420 = vmatpush2.bf16.msra.mxu0 %v1185
        %1421 = vmatprep.subr.bf16.mxu0 %v1184
        %1422 = vmatpush2.bf16.msra.mxu0 %v1183
        %1423 = vmatprep.mubr.bf16.mxu0 %v720
        %1424 = vmatmul.mubr.bf16.gmra.mxu0 %v719
        %v1425 = vpop.f32.mrf.mxu0
        %v1426 = vadd.f32 0.0, %v1425
        %v1427 = vpop.f32.mrf.mxu0
        %v1428 = vadd.f32 0.0, %v1427
        %v1429 = vpop.f32.mrf.mxu0
        %v1430 = vadd.f32 0.0, %v1429
        %v1431 = vpop.f32.mrf.mxu0
        %v1432 = vadd.f32 0.0, %v1431
        %1433 = vmatprep.mubr.bf16.mxu0 %v727
        %1434 = vmatmul.mubr.bf16.gmra.mxu0 %v726
        %v1435 = vpop.f32.mrf.mxu0
        %v1436 = vadd.f32 0.0, %v1435
        %v1437 = vpop.f32.mrf.mxu0
        %v1438 = vadd.f32 0.0, %v1437
        %v1439 = vpop.f32.mrf.mxu0
        %v1440 = vadd.f32 0.0, %v1439
        %v1441 = vpop.f32.mrf.mxu0
        %v1442 = vadd.f32 0.0, %v1441
        %1443 = vmatprep.mubr.bf16.mxu0 %v734
        %1444 = vmatmul.mubr.bf16.gmra.mxu0 %v733
        %v1445 = vpop.f32.mrf.mxu0
        %v1446 = vadd.f32 0.0, %v1445
        %v1447 = vpop.f32.mrf.mxu0
        %v1448 = vadd.f32 0.0, %v1447
        %v1449 = vpop.f32.mrf.mxu0
        %v1450 = vadd.f32 0.0, %v1449
        %v1451 = vpop.f32.mrf.mxu0
        %v1452 = vadd.f32 0.0, %v1451
        %1453 = vmatprep.mubr.bf16.mxu0 %v741
        %1454 = vmatmul.mubr.bf16.gmra.mxu0 %v740
        %v1455 = vpop.f32.mrf.mxu0
        %v1456 = vadd.f32 0.0, %v1455
        %v1457 = vpop.f32.mrf.mxu0
        %v1458 = vadd.f32 0.0, %v1457
        %v1459 = vpop.f32.mrf.mxu0
        %v1460 = vadd.f32 0.0, %v1459
        %v1461 = vpop.f32.mrf.mxu0
        %v1462 = vadd.f32 0.0, %v1461
        %1463 = vmatprep.mubr.bf16.mxu0 %v748
        %1464 = vmatmul.mubr.bf16.gmra.mxu0 %v747
        %v1465 = vpop.f32.mrf.mxu0
        %v1466 = vadd.f32 0.0, %v1465
        %v1467 = vpop.f32.mrf.mxu0
        %v1468 = vadd.f32 0.0, %v1467
        %v1469 = vpop.f32.mrf.mxu0
        %v1470 = vadd.f32 0.0, %v1469
        %v1471 = vpop.f32.mrf.mxu0
        %v1472 = vadd.f32 0.0, %v1471
        %1473 = vmatprep.mubr.bf16.mxu0 %v755
        %1474 = vmatmul.mubr.bf16.gmra.mxu0 %v754
        %v1475 = vpop.f32.mrf.mxu0
        %v1476 = vadd.f32 0.0, %v1475
        %v1477 = vpop.f32.mrf.mxu0
        %v1478 = vadd.f32 0.0, %v1477
        %v1479 = vpop.f32.mrf.mxu0
        %v1480 = vadd.f32 0.0, %v1479
        %v1481 = vpop.f32.mrf.mxu0
        %v1482 = vadd.f32 0.0, %v1481
        %1483 = vmatprep.mubr.bf16.mxu0 %v762
        %1484 = vmatmul.mubr.bf16.gmra.mxu0 %v761
        %v1485 = vpop.f32.mrf.mxu0
        %v1486 = vadd.f32 0.0, %v1485
        %v1487 = vpop.f32.mrf.mxu0
        %v1488 = vadd.f32 0.0, %v1487
        %v1489 = vpop.f32.mrf.mxu0
        %v1490 = vadd.f32 0.0, %v1489
        %v1491 = vpop.f32.mrf.mxu0
        %v1492 = vadd.f32 0.0, %v1491
        %1493 = vmatprep.mubr.bf16.mxu0 %v769
        %1494 = vmatmul.mubr.bf16.gmra.mxu0 %v768
        %v1495 = vpop.f32.mrf.mxu0
        %v1496 = vadd.f32 0.0, %v1495
        %v1497 = vpop.f32.mrf.mxu0
        %v1498 = vadd.f32 0.0, %v1497
        %v1499 = vpop.f32.mrf.mxu0
        %v1500 = vadd.f32 0.0, %v1499
        %v1501 = vpop.f32.mrf.mxu0
        %v1502 = vadd.f32 0.0, %v1501
        %1503 = vdwg.mxu0
        %1504 = vmatprep.subr.bf16.mxu0 %v1214
        %1505 = vmatpush1.bf16.msra.mxu0 %v1213
        %1506 = vmatprep.subr.bf16.mxu0 %v1212
        %1507 = vmatpush1.bf16.msra.mxu0 %v1211
        %1508 = vmatprep.subr.bf16.mxu0 %v1210
        %1509 = vmatpush1.bf16.msra.mxu0 %v1209
        %1510 = vmatprep.subr.bf16.mxu0 %v1208
        %1511 = vmatpush1.bf16.msra.mxu0 %v1207
        %1512 = vmatprep.subr.bf16.mxu0 %v1206
        %1513 = vmatpush1.bf16.msra.mxu0 %v1205
        %1514 = vmatprep.subr.bf16.mxu0 %v1204
        %1515 = vmatpush1.bf16.msra.mxu0 %v1203
        %1516 = vmatprep.subr.bf16.mxu0 %v1202
        %1517 = vmatpush1.bf16.msra.mxu0 %v1201
        %1518 = vmatprep.subr.bf16.mxu0 %v1200
        %1519 = vmatpush1.bf16.msra.mxu0 %v1199
        %1520 = vmatprep.subr.bf16.mxu0 %v1230
        %1521 = vmatpush2.bf16.msra.mxu0 %v1229
        %1522 = vmatprep.subr.bf16.mxu0 %v1228
        %1523 = vmatpush2.bf16.msra.mxu0 %v1227
        %1524 = vmatprep.subr.bf16.mxu0 %v1226
        %1525 = vmatpush2.bf16.msra.mxu0 %v1225
        %1526 = vmatprep.subr.bf16.mxu0 %v1224
        %1527 = vmatpush2.bf16.msra.mxu0 %v1223
        %1528 = vmatprep.subr.bf16.mxu0 %v1222
        %1529 = vmatpush2.bf16.msra.mxu0 %v1221
        %1530 = vmatprep.subr.bf16.mxu0 %v1220
        %1531 = vmatpush2.bf16.msra.mxu0 %v1219
        %1532 = vmatprep.subr.bf16.mxu0 %v1218
        %1533 = vmatpush2.bf16.msra.mxu0 %v1217
        %1534 = vmatprep.subr.bf16.mxu0 %v1216
        %1535 = vmatpush2.bf16.msra.mxu0 %v1215
        %1536 = vmatprep.mubr.bf16.mxu0 %v722
        %1537 = vmatmul.mubr.bf16.gmra.mxu0 %v721
        %v1538 = vpop.f32.mrf.mxu0
        %v1539 = vadd.f32 %v1426, %v1538
        %v1540 = vpop.f32.mrf.mxu0
        %v1541 = vadd.f32 %v1428, %v1540
        %v1542 = vpop.f32.mrf.mxu0
        %v1543 = vadd.f32 %v1430, %v1542
        %v1544 = vpop.f32.mrf.mxu0
        %v1545 = vadd.f32 %v1432, %v1544
        %1546 = vmatprep.mubr.bf16.mxu0 %v729
        %1547 = vmatmul.mubr.bf16.gmra.mxu0 %v728
        %v1548 = vpop.f32.mrf.mxu0
        %v1549 = vadd.f32 %v1436, %v1548
        %v1550 = vpop.f32.mrf.mxu0
        %v1551 = vadd.f32 %v1438, %v1550
        %v1552 = vpop.f32.mrf.mxu0
        %v1553 = vadd.f32 %v1440, %v1552
        %v1554 = vpop.f32.mrf.mxu0
        %v1555 = vadd.f32 %v1442, %v1554
        %1556 = vmatprep.mubr.bf16.mxu0 %v736
        %1557 = vmatmul.mubr.bf16.gmra.mxu0 %v735
        %v1558 = vpop.f32.mrf.mxu0
        %v1559 = vadd.f32 %v1446, %v1558
        %v1560 = vpop.f32.mrf.mxu0
        %v1561 = vadd.f32 %v1448, %v1560
        %v1562 = vpop.f32.mrf.mxu0
        %v1563 = vadd.f32 %v1450, %v1562
        %v1564 = vpop.f32.mrf.mxu0
        %v1565 = vadd.f32 %v1452, %v1564
        %1566 = vmatprep.mubr.bf16.mxu0 %v743
        %1567 = vmatmul.mubr.bf16.gmra.mxu0 %v742
        %v1568 = vpop.f32.mrf.mxu0
        %v1569 = vadd.f32 %v1456, %v1568
        %v1570 = vpop.f32.mrf.mxu0
        %v1571 = vadd.f32 %v1458, %v1570
        %v1572 = vpop.f32.mrf.mxu0
        %v1573 = vadd.f32 %v1460, %v1572
        %v1574 = vpop.f32.mrf.mxu0
        %v1575 = vadd.f32 %v1462, %v1574
        %1576 = vmatprep.mubr.bf16.mxu0 %v750
        %1577 = vmatmul.mubr.bf16.gmra.mxu0 %v749
        %v1578 = vpop.f32.mrf.mxu0
        %v1579 = vadd.f32 %v1466, %v1578
        %v1580 = vpop.f32.mrf.mxu0
        %v1581 = vadd.f32 %v1468, %v1580
        %v1582 = vpop.f32.mrf.mxu0
        %v1583 = vadd.f32 %v1470, %v1582
        %v1584 = vpop.f32.mrf.mxu0
        %v1585 = vadd.f32 %v1472, %v1584
        %1586 = vmatprep.mubr.bf16.mxu0 %v757
        %1587 = vmatmul.mubr.bf16.gmra.mxu0 %v756
        %v1588 = vpop.f32.mrf.mxu0
        %v1589 = vadd.f32 %v1476, %v1588
        %v1590 = vpop.f32.mrf.mxu0
        %v1591 = vadd.f32 %v1478, %v1590
        %v1592 = vpop.f32.mrf.mxu0
        %v1593 = vadd.f32 %v1480, %v1592
        %v1594 = vpop.f32.mrf.mxu0
        %v1595 = vadd.f32 %v1482, %v1594
        %1596 = vmatprep.mubr.bf16.mxu0 %v764
        %1597 = vmatmul.mubr.bf16.gmra.mxu0 %v763
        %v1598 = vpop.f32.mrf.mxu0
        %v1599 = vadd.f32 %v1486, %v1598
        %v1600 = vpop.f32.mrf.mxu0
        %v1601 = vadd.f32 %v1488, %v1600
        %v1602 = vpop.f32.mrf.mxu0
        %v1603 = vadd.f32 %v1490, %v1602
        %v1604 = vpop.f32.mrf.mxu0
        %v1605 = vadd.f32 %v1492, %v1604
        %1606 = vmatprep.mubr.bf16.mxu0 %v771
        %1607 = vmatmul.mubr.bf16.gmra.mxu0 %v770
        %v1608 = vpop.f32.mrf.mxu0
        %v1609 = vadd.f32 %v1496, %v1608
        %v1610 = vpop.f32.mrf.mxu0
        %v1611 = vadd.f32 %v1498, %v1610
        %v1612 = vpop.f32.mrf.mxu0
        %v1613 = vadd.f32 %v1500, %v1612
        %v1614 = vpop.f32.mrf.mxu0
        %v1615 = vadd.f32 %v1502, %v1614
        %1616 = vdwg.mxu0
        %1617 = vmatprep.subr.bf16.mxu0 %v1246
        %1618 = vmatpush1.bf16.msra.mxu0 %v1245
        %1619 = vmatprep.subr.bf16.mxu0 %v1244
        %1620 = vmatpush1.bf16.msra.mxu0 %v1243
        %1621 = vmatprep.subr.bf16.mxu0 %v1242
        %1622 = vmatpush1.bf16.msra.mxu0 %v1241
        %1623 = vmatprep.subr.bf16.mxu0 %v1240
        %1624 = vmatpush1.bf16.msra.mxu0 %v1239
        %1625 = vmatprep.subr.bf16.mxu0 %v1238
        %1626 = vmatpush1.bf16.msra.mxu0 %v1237
        %1627 = vmatprep.subr.bf16.mxu0 %v1236
        %1628 = vmatpush1.bf16.msra.mxu0 %v1235
        %1629 = vmatprep.subr.bf16.mxu0 %v1234
        %1630 = vmatpush1.bf16.msra.mxu0 %v1233
        %1631 = vmatprep.subr.bf16.mxu0 %v1232
        %1632 = vmatpush1.bf16.msra.mxu0 %v1231
        %1633 = vmatprep.subr.bf16.mxu0 %v1262
        %1634 = vmatpush2.bf16.msra.mxu0 %v1261
        %1635 = vmatprep.subr.bf16.mxu0 %v1260
        %1636 = vmatpush2.bf16.msra.mxu0 %v1259
        %1637 = vmatprep.subr.bf16.mxu0 %v1258
        %1638 = vmatpush2.bf16.msra.mxu0 %v1257
        %1639 = vmatprep.subr.bf16.mxu0 %v1256
        %1640 = vmatpush2.bf16.msra.mxu0 %v1255
        %1641 = vmatprep.subr.bf16.mxu0 %v1254
        %1642 = vmatpush2.bf16.msra.mxu0 %v1253
        %1643 = vmatprep.subr.bf16.mxu0 %v1252
        %1644 = vmatpush2.bf16.msra.mxu0 %v1251
        %1645 = vmatprep.subr.bf16.mxu0 %v1250
        %1646 = vmatpush2.bf16.msra.mxu0 %v1249
        %1647 = vmatprep.subr.bf16.mxu0 %v1248
        %1648 = vmatpush2.bf16.msra.mxu0 %v1247
        %1649 = vmatprep.mubr.bf16.mxu0 %v724
        %1650 = vmatmul.mubr.bf16.gmra.mxu0 %v723
        %v1651 = vpop.f32.mrf.mxu0
        %v1652 = vadd.f32 %v1539, %v1651
        %v1653 = vpop.f32.mrf.mxu0
        %v1654 = vadd.f32 %v1541, %v1653
        %v1655 = vpop.f32.mrf.mxu0
        %v1656 = vadd.f32 %v1543, %v1655
        %v1657 = vpop.f32.mrf.mxu0
        %v1658 = vadd.f32 %v1545, %v1657
        %1659 = vmatprep.mubr.bf16.mxu0 %v731
        %1660 = vmatmul.mubr.bf16.gmra.mxu0 %v730
        %v1661 = vpop.f32.mrf.mxu0
        %v1662 = vadd.f32 %v1549, %v1661
        %v1663 = vpop.f32.mrf.mxu0
        %v1664 = vadd.f32 %v1551, %v1663
        %v1665 = vpop.f32.mrf.mxu0
        %v1666 = vadd.f32 %v1553, %v1665
        %v1667 = vpop.f32.mrf.mxu0
        %v1668 = vadd.f32 %v1555, %v1667
        %1669 = vmatprep.mubr.bf16.mxu0 %v738
        %1670 = vmatmul.mubr.bf16.gmra.mxu0 %v737
        %v1671 = vpop.f32.mrf.mxu0
        %v1672 = vadd.f32 %v1559, %v1671
        %v1673 = vpop.f32.mrf.mxu0
        %v1674 = vadd.f32 %v1561, %v1673
        %v1675 = vpop.f32.mrf.mxu0
        %v1676 = vadd.f32 %v1563, %v1675
        %v1677 = vpop.f32.mrf.mxu0
        %v1678 = vadd.f32 %v1565, %v1677
        %1679 = vmatprep.mubr.bf16.mxu0 %v745
        %1680 = vmatmul.mubr.bf16.gmra.mxu0 %v744
        %v1681 = vpop.f32.mrf.mxu0
        %v1682 = vadd.f32 %v1569, %v1681
        %v1683 = vpop.f32.mrf.mxu0
        %v1684 = vadd.f32 %v1571, %v1683
        %v1685 = vpop.f32.mrf.mxu0
        %v1686 = vadd.f32 %v1573, %v1685
        %v1687 = vpop.f32.mrf.mxu0
        %v1688 = vadd.f32 %v1575, %v1687
        %1689 = vmatprep.mubr.bf16.mxu0 %v752
        %1690 = vmatmul.mubr.bf16.gmra.mxu0 %v751
        %v1691 = vpop.f32.mrf.mxu0
        %v1692 = vadd.f32 %v1579, %v1691
        %v1693 = vpop.f32.mrf.mxu0
        %v1694 = vadd.f32 %v1581, %v1693
        %v1695 = vpop.f32.mrf.mxu0
        %v1696 = vadd.f32 %v1583, %v1695
        %v1697 = vpop.f32.mrf.mxu0
        %v1698 = vadd.f32 %v1585, %v1697
        %1699 = vmatprep.mubr.bf16.mxu0 %v759
        %1700 = vmatmul.mubr.bf16.gmra.mxu0 %v758
        %v1701 = vpop.f32.mrf.mxu0
        %v1702 = vadd.f32 %v1589, %v1701
        %v1703 = vpop.f32.mrf.mxu0
        %v1704 = vadd.f32 %v1591, %v1703
        %v1705 = vpop.f32.mrf.mxu0
        %v1706 = vadd.f32 %v1593, %v1705
        %v1707 = vpop.f32.mrf.mxu0
        %v1708 = vadd.f32 %v1595, %v1707
        %1709 = vmatprep.mubr.bf16.mxu0 %v766
        %1710 = vmatmul.mubr.bf16.gmra.mxu0 %v765
        %v1711 = vpop.f32.mrf.mxu0
        %v1712 = vadd.f32 %v1599, %v1711
        %v1713 = vpop.f32.mrf.mxu0
        %v1714 = vadd.f32 %v1601, %v1713
        %v1715 = vpop.f32.mrf.mxu0
        %v1716 = vadd.f32 %v1603, %v1715
        %v1717 = vpop.f32.mrf.mxu0
        %v1718 = vadd.f32 %v1605, %v1717
        %1719 = vmatprep.mubr.bf16.mxu0 %v773
        %1720 = vmatmul.mubr.bf16.gmra.mxu0 %v772
        %v1721 = vpop.f32.mrf.mxu0
        %v1722 = vadd.f32 %v1609, %v1721
        %v1723 = vpop.f32.mrf.mxu0
        %v1724 = vadd.f32 %v1611, %v1723
        %v1725 = vpop.f32.mrf.mxu0
        %v1726 = vadd.f32 %v1613, %v1725
        %v1727 = vpop.f32.mrf.mxu0
        %v1728 = vadd.f32 %v1615, %v1727
        %1729 = vdwg.mxu0
        %1730 = vmatprep.subr.bf16.mxu0 %v1278
        %1731 = vmatpush1.bf16.msra.mxu0 %v1277
        %1732 = vmatprep.subr.bf16.mxu0 %v1276
        %1733 = vmatpush1.bf16.msra.mxu0 %v1275
        %1734 = vmatprep.subr.bf16.mxu0 %v1274
        %1735 = vmatpush1.bf16.msra.mxu0 %v1273
        %1736 = vmatprep.subr.bf16.mxu0 %v1272
        %1737 = vmatpush1.bf16.msra.mxu0 %v1271
        %1738 = vmatprep.subr.bf16.mxu0 %v1270
        %1739 = vmatpush1.bf16.msra.mxu0 %v1269
        %1740 = vmatprep.subr.bf16.mxu0 %v1268
        %1741 = vmatpush1.bf16.msra.mxu0 %v1267
        %1742 = vmatprep.subr.bf16.mxu0 %v1266
        %1743 = vmatpush1.bf16.msra.mxu0 %v1265
        %1744 = vmatprep.subr.bf16.mxu0 %v1264
        %1745 = vmatpush1.bf16.msra.mxu0 %v1263
        %1746 = vmatprep.subr.bf16.mxu0 0
        %1747 = vmatpush2.bf16.msra.mxu0 0
        %1748 = vmatprep.subr.bf16.mxu0 0
        %1749 = vmatpush2.bf16.msra.mxu0 0
        %1750 = vmatprep.subr.bf16.mxu0 0
        %1751 = vmatpush2.bf16.msra.mxu0 0
        %1752 = vmatprep.subr.bf16.mxu0 0
        %1753 = vmatpush2.bf16.msra.mxu0 0
        %1754 = vmatprep.subr.bf16.mxu0 0
        %1755 = vmatpush2.bf16.msra.mxu0 0
        %1756 = vmatprep.subr.bf16.mxu0 0
        %1757 = vmatpush2.bf16.msra.mxu0 0
        %1758 = vmatprep.subr.bf16.mxu0 0
        %1759 = vmatpush2.bf16.msra.mxu0 0
        %1760 = vmatprep.subr.bf16.mxu0 0
        %1761 = vmatpush2.bf16.msra.mxu0 0
        %1762 = vmatprep.mubr.bf16.mxu0 0
        %1763 = vmatmul.mubr.bf16.gmra.mxu0 %v725
        %v1764 = vpop.f32.mrf.mxu0
        %v1765 = vadd.f32 %v1652, %v1764
        %v1766 = vpop.f32.mrf.mxu0
        %v1767 = vadd.f32 %v1654, %v1766
        %v1768 = vpop.f32.mrf.mxu0
        %v1769 = vadd.f32 %v1656, %v1768
        %v1770 = vpop.f32.mrf.mxu0
        %v1771 = vadd.f32 %v1658, %v1770
        %1772 = vmatprep.mubr.bf16.mxu0 0
        %1773 = vmatmul.mubr.bf16.gmra.mxu0 %v732
        %v1774 = vpop.f32.mrf.mxu0
        %v1775 = vadd.f32 %v1662, %v1774
        %v1776 = vpop.f32.mrf.mxu0
        %v1777 = vadd.f32 %v1664, %v1776
        %v1778 = vpop.f32.mrf.mxu0
        %v1779 = vadd.f32 %v1666, %v1778
        %v1780 = vpop.f32.mrf.mxu0
        %v1781 = vadd.f32 %v1668, %v1780
        %1782 = vmatprep.mubr.bf16.mxu0 0
        %1783 = vmatmul.mubr.bf16.gmra.mxu0 %v739
        %v1784 = vpop.f32.mrf.mxu0
        %v1785 = vadd.f32 %v1672, %v1784
        %v1786 = vpop.f32.mrf.mxu0
        %v1787 = vadd.f32 %v1674, %v1786
        %v1788 = vpop.f32.mrf.mxu0
        %v1789 = vadd.f32 %v1676, %v1788
        %v1790 = vpop.f32.mrf.mxu0
        %v1791 = vadd.f32 %v1678, %v1790
        %1792 = vmatprep.mubr.bf16.mxu0 0
        %1793 = vmatmul.mubr.bf16.gmra.mxu0 %v746
        %v1794 = vpop.f32.mrf.mxu0
        %v1795 = vadd.f32 %v1682, %v1794
        %v1796 = vpop.f32.mrf.mxu0
        %v1797 = vadd.f32 %v1684, %v1796
        %v1798 = vpop.f32.mrf.mxu0
        %v1799 = vadd.f32 %v1686, %v1798
        %v1800 = vpop.f32.mrf.mxu0
        %v1801 = vadd.f32 %v1688, %v1800
        %1802 = vmatprep.mubr.bf16.mxu0 0
        %1803 = vmatmul.mubr.bf16.gmra.mxu0 %v753
        %v1804 = vpop.f32.mrf.mxu0
        %v1805 = vadd.f32 %v1692, %v1804
        %v1806 = vpop.f32.mrf.mxu0
        %v1807 = vadd.f32 %v1694, %v1806
        %v1808 = vpop.f32.mrf.mxu0
        %v1809 = vadd.f32 %v1696, %v1808
        %v1810 = vpop.f32.mrf.mxu0
        %v1811 = vadd.f32 %v1698, %v1810
        %1812 = vmatprep.mubr.bf16.mxu0 0
        %1813 = vmatmul.mubr.bf16.gmra.mxu0 %v760
        %v1814 = vpop.f32.mrf.mxu0
        %v1815 = vadd.f32 %v1702, %v1814
        %v1816 = vpop.f32.mrf.mxu0
        %v1817 = vadd.f32 %v1704, %v1816
        %v1818 = vpop.f32.mrf.mxu0
        %v1819 = vadd.f32 %v1706, %v1818
        %v1820 = vpop.f32.mrf.mxu0
        %v1821 = vadd.f32 %v1708, %v1820
        %1822 = vmatprep.mubr.bf16.mxu0 0
        %1823 = vmatmul.mubr.bf16.gmra.mxu0 %v767
        %v1824 = vpop.f32.mrf.mxu0
        %v1825 = vadd.f32 %v1712, %v1824
        %v1826 = vpop.f32.mrf.mxu0
        %v1827 = vadd.f32 %v1714, %v1826
        %v1828 = vpop.f32.mrf.mxu0
        %v1829 = vadd.f32 %v1716, %v1828
        %v1830 = vpop.f32.mrf.mxu0
        %v1831 = vadd.f32 %v1718, %v1830
        %1832 = vmatprep.mubr.bf16.mxu0 0
        %1833 = vmatmul.mubr.bf16.gmra.mxu0 %v774
        %v1834 = vpop.f32.mrf.mxu0
        %v1835 = vadd.f32 %v1722, %v1834
        %v1836 = vpop.f32.mrf.mxu0
        %v1837 = vadd.f32 %v1724, %v1836
        %v1838 = vpop.f32.mrf.mxu0
        %v1839 = vadd.f32 %v1726, %v1838
        %v1840 = vpop.f32.mrf.mxu0
        %v1841 = vadd.f32 %v1728, %v1840
        %1842 = vdwg.mxu0
        %v1843 = vadd.f32 %v335, %v1765
        %v1844 = vadd.f32 %v336, %v1767
        %v1845 = vadd.f32 %v337, %v1769
        %v1846 = vadd.f32 %v338, %v1771
        %v1847 = vadd.f32 %v339, %v1775
        %v1848 = vadd.f32 %v340, %v1777
        %v1849 = vadd.f32 %v341, %v1779
        %v1850 = vadd.f32 %v342, %v1781
        %v1851 = vadd.f32 %v343, %v1785
        %v1852 = vadd.f32 %v344, %v1787
        %v1853 = vadd.f32 %v345, %v1789
        %v1854 = vadd.f32 %v346, %v1791
        %v1855 = vadd.f32 %v347, %v1795
        %v1856 = vadd.f32 %v348, %v1797
        %v1857 = vadd.f32 %v349, %v1799
        %v1858 = vadd.f32 %v350, %v1801
        %v1859 = vadd.f32 %v351, %v1805
        %v1860 = vadd.f32 %v352, %v1807
        %v1861 = vadd.f32 %v353, %v1809
        %v1862 = vadd.f32 %v354, %v1811
        %v1863 = vadd.f32 %v355, %v1815
        %v1864 = vadd.f32 %v356, %v1817
        %v1865 = vadd.f32 %v357, %v1819
        %v1866 = vadd.f32 %v358, %v1821
        %v1867 = vadd.f32 %v359, %v1825
        %v1868 = vadd.f32 %v360, %v1827
        %v1869 = vadd.f32 %v361, %v1829
        %v1870 = vadd.f32 %v362, %v1831
        %v1871 = vadd.f32 %v363, %v1835
        %v1872 = vadd.f32 %v364, %v1837
        %v1873 = vadd.f32 %v365, %v1839
        %v1874 = vadd.f32 %v366, %v1841
        %1875 = vst [vmem:[#allocation2] sm:$0xff] %v1843
        %1876 = vst [vmem:[#allocation2 + $0x8] sm:$0xff] %v1844
        %1877 = vst [vmem:[#allocation2 + $0x10] sm:$0xff] %v1845
        %1878 = vst [vmem:[#allocation2 + $0x18] sm:$0xff] %v1846
        %1879 = vst [vmem:[#allocation2 + $0x20] sm:$0xff] %v1847
        %1880 = vst [vmem:[#allocation2 + $0x28] sm:$0xff] %v1848
        %1881 = vst [vmem:[#allocation2 + $0x30] sm:$0xff] %v1849
        %1882 = vst [vmem:[#allocation2 + $0x38] sm:$0xff] %v1850
        %1883 = vst [vmem:[#allocation2 + $0x40] sm:$0xff] %v1851
        %1884 = vst [vmem:[#allocation2 + $0x48] sm:$0xff] %v1852
        %1885 = vst [vmem:[#allocation2 + $0x50] sm:$0xff] %v1853
        %1886 = vst [vmem:[#allocation2 + $0x58] sm:$0xff] %v1854
        %1887 = vst [vmem:[#allocation2 + $0x60] sm:$0xff] %v1855
        %1888 = vst [vmem:[#allocation2 + $0x68] sm:$0xff] %v1856
        %1889 = vst [vmem:[#allocation2 + $0x70] sm:$0xff] %v1857
        %1890 = vst [vmem:[#allocation2 + $0x78] sm:$0xff] %v1858
        %1891 = vst [vmem:[#allocation2 + $0x80] sm:$0xff] %v1859
        %1892 = vst [vmem:[#allocation2 + $0x88] sm:$0xff] %v1860
        %1893 = vst [vmem:[#allocation2 + $0x90] sm:$0xff] %v1861
        %1894 = vst [vmem:[#allocation2 + $0x98] sm:$0xff] %v1862
        %1895 = vst [vmem:[#allocation2 + $0xa0] sm:$0xff] %v1863
        %1896 = vst [vmem:[#allocation2 + $0xa8] sm:$0xff] %v1864
        %1897 = vst [vmem:[#allocation2 + $0xb0] sm:$0xff] %v1865
        %1898 = vst [vmem:[#allocation2 + $0xb8] sm:$0xff] %v1866
        %1899 = vst [vmem:[#allocation2 + $0xc0] sm:$0xff] %v1867
        %1900 = vst [vmem:[#allocation2 + $0xc8] sm:$0xff] %v1868
        %1901 = vst [vmem:[#allocation2 + $0xd0] sm:$0xff] %v1869
        %1902 = vst [vmem:[#allocation2 + $0xd8] sm:$0xff] %v1870
        %1903 = vst [vmem:[#allocation2 + $0xe0] sm:$0xff] %v1871
        %1904 = vst [vmem:[#allocation2 + $0xe8] sm:$0xff] %v1872
        %1905 = vst [vmem:[#allocation2 + $0xf0] sm:$0xff] %v1873
        %1906 = vst [vmem:[#allocation2 + $0xf8] sm:$0xff] %v1874
        %p1907 = scmp.eq.s32.totalorder %s28, 6
        // Predicated region
        $region57: #{tpu_custom_call.1} parent=35 // pred_check
          %p1908 = pneg %p1907
        $region58: #{tpu_custom_call.1} parent=35 // pred_check_branch
          %1910 = sbr.rel (%p1908) target = $region60
        $region59: #{tpu_custom_call.1} parent=35 // pred_region
          %v1911 = vld [vmem:[#allocation2] sm:$0xff]
          %v1912 = vld [vmem:[#allocation2 + $0x8] sm:$0xff]
          %v1913 = vld [vmem:[#allocation2 + $0x10] sm:$0xff]
          %v1914 = vld [vmem:[#allocation2 + $0x18] sm:$0xff]
          %v1915 = vld [vmem:[#allocation2 + $0x20] sm:$0xff]
          %v1916 = vld [vmem:[#allocation2 + $0x28] sm:$0xff]
          %v1917 = vld [vmem:[#allocation2 + $0x30] sm:$0xff]
          %v1918 = vld [vmem:[#allocation2 + $0x38] sm:$0xff]
          %v1919 = vld [vmem:[#allocation2 + $0x40] sm:$0xff]
          %v1920 = vld [vmem:[#allocation2 + $0x48] sm:$0xff]
          %v1921 = vld [vmem:[#allocation2 + $0x50] sm:$0xff]
          %v1922 = vld [vmem:[#allocation2 + $0x58] sm:$0xff]
          %v1923 = vld [vmem:[#allocation2 + $0x60] sm:$0xff]
          %v1924 = vld [vmem:[#allocation2 + $0x68] sm:$0xff]
          %v1925 = vld [vmem:[#allocation2 + $0x70] sm:$0xff]
          %v1926 = vld [vmem:[#allocation2 + $0x78] sm:$0xff]
          %v1927 = vld [vmem:[#allocation2 + $0x80] sm:$0xff]
          %v1928 = vld [vmem:[#allocation2 + $0x88] sm:$0xff]
          %v1929 = vld [vmem:[#allocation2 + $0x90] sm:$0xff]
          %v1930 = vld [vmem:[#allocation2 + $0x98] sm:$0xff]
          %v1931 = vld [vmem:[#allocation2 + $0xa0] sm:$0xff]
          %v1932 = vld [vmem:[#allocation2 + $0xa8] sm:$0xff]
          %v1933 = vld [vmem:[#allocation2 + $0xb0] sm:$0xff]
          %v1934 = vld [vmem:[#allocation2 + $0xb8] sm:$0xff]
          %v1935 = vld [vmem:[#allocation2 + $0xc0] sm:$0xff]
          %v1936 = vld [vmem:[#allocation2 + $0xc8] sm:$0xff]
          %v1937 = vld [vmem:[#allocation2 + $0xd0] sm:$0xff]
          %v1938 = vld [vmem:[#allocation2 + $0xd8] sm:$0xff]
          %v1939 = vld [vmem:[#allocation2 + $0xe0] sm:$0xff]
          %v1940 = vld [vmem:[#allocation2 + $0xe8] sm:$0xff]
          %v1941 = vld [vmem:[#allocation2 + $0xf0] sm:$0xff]
          %v1942 = vld [vmem:[#allocation2 + $0xf8] sm:$0xff]
          %v1943 = vld [vmem:[#allocation8] sm:$0x3]
          %v1945 = vlaneseq
          %v1946 = vshrl.u32 %v1945, 7
          %v1947 = vsub.s32 0, %v1946
          %v1948 = vrot.slane %v1943, %v1947
          %v1949 = vlaneseq
          %v1950 = vshrl.u32 %v1949, 7
          %v1951 = vsub.s32 1, %v1950
          %v1952 = vrot.slane %v1943, %v1951
          %v1955 = vadd.f32 %v1911, %v1948
          %v1956 = vadd.f32 %v1912, %v1952
          %v1957 = vadd.f32 %v1913, %v1948
          %v1958 = vadd.f32 %v1914, %v1952
          %v1959 = vadd.f32 %v1915, %v1948
          %v1960 = vadd.f32 %v1916, %v1952
          %v1961 = vadd.f32 %v1917, %v1948
          %v1962 = vadd.f32 %v1918, %v1952
          %v1963 = vadd.f32 %v1919, %v1948
          %v1964 = vadd.f32 %v1920, %v1952
          %v1965 = vadd.f32 %v1921, %v1948
          %v1966 = vadd.f32 %v1922, %v1952
          %v1967 = vadd.f32 %v1923, %v1948
          %v1968 = vadd.f32 %v1924, %v1952
          %v1969 = vadd.f32 %v1925, %v1948
          %v1970 = vadd.f32 %v1926, %v1952
          %v1971 = vadd.f32 %v1927, %v1948
          %v1972 = vadd.f32 %v1928, %v1952
          %v1973 = vadd.f32 %v1929, %v1948
          %v1974 = vadd.f32 %v1930, %v1952
          %v1975 = vadd.f32 %v1931, %v1948
          %v1976 = vadd.f32 %v1932, %v1952
          %v1977 = vadd.f32 %v1933, %v1948
          %v1978 = vadd.f32 %v1934, %v1952
          %v1979 = vadd.f32 %v1935, %v1948
          %v1980 = vadd.f32 %v1936, %v1952
          %v1981 = vadd.f32 %v1937, %v1948
          %v1982 = vadd.f32 %v1938, %v1952
          %v1983 = vadd.f32 %v1939, %v1948
          %v1984 = vadd.f32 %v1940, %v1952
          %v1985 = vadd.f32 %v1941, %v1948
          %v1986 = vadd.f32 %v1942, %v1952
          %v1987 = vmax.f32 %v1955, 0.0
          %v1988 = vmax.f32 %v1956, 0.0
          %v1989 = vmax.f32 %v1957, 0.0
          %v1990 = vmax.f32 %v1958, 0.0
          %v1991 = vmax.f32 %v1959, 0.0
          %v1992 = vmax.f32 %v1960, 0.0
          %v1993 = vmax.f32 %v1961, 0.0
          %v1994 = vmax.f32 %v1962, 0.0
          %v1995 = vmax.f32 %v1963, 0.0
          %v1996 = vmax.f32 %v1964, 0.0
          %v1997 = vmax.f32 %v1965, 0.0
          %v1998 = vmax.f32 %v1966, 0.0
          %v1999 = vmax.f32 %v1967, 0.0
          %v2000 = vmax.f32 %v1968, 0.0
          %v2001 = vmax.f32 %v1969, 0.0
          %v2002 = vmax.f32 %v1970, 0.0
          %v2003 = vmax.f32 %v1971, 0.0
          %v2004 = vmax.f32 %v1972, 0.0
          %v2005 = vmax.f32 %v1973, 0.0
          %v2006 = vmax.f32 %v1974, 0.0
          %v2007 = vmax.f32 %v1975, 0.0
          %v2008 = vmax.f32 %v1976, 0.0
          %v2009 = vmax.f32 %v1977, 0.0
          %v2010 = vmax.f32 %v1978, 0.0
          %v2011 = vmax.f32 %v1979, 0.0
          %v2012 = vmax.f32 %v1980, 0.0
          %v2013 = vmax.f32 %v1981, 0.0
          %v2014 = vmax.f32 %v1982, 0.0
          %v2015 = vmax.f32 %v1983, 0.0
          %v2016 = vmax.f32 %v1984, 0.0
          %v2017 = vmax.f32 %v1985, 0.0
          %v2018 = vmax.f32 %v1986, 0.0
          %v2019 = vpack.c.bf16 %v1989, %v1987
          %v2020 = vpack.c.bf16 %v1990, %v1988
          %v2021 = vpack.c.bf16 %v1993, %v1991
          %v2022 = vpack.c.bf16 %v1994, %v1992
          %v2023 = vpack.c.bf16 %v1997, %v1995
          %v2024 = vpack.c.bf16 %v1998, %v1996
          %v2025 = vpack.c.bf16 %v2001, %v1999
          %v2026 = vpack.c.bf16 %v2002, %v2000
          %v2027 = vpack.c.bf16 %v2005, %v2003
          %v2028 = vpack.c.bf16 %v2006, %v2004
          %v2029 = vpack.c.bf16 %v2009, %v2007
          %v2030 = vpack.c.bf16 %v2010, %v2008
          %v2031 = vpack.c.bf16 %v2013, %v2011
          %v2032 = vpack.c.bf16 %v2014, %v2012
          %v2033 = vpack.c.bf16 %v2017, %v2015
          %v2034 = vpack.c.bf16 %v2018, %v2016
          %v2035 = vld [vmem:[#allocation9] sm:$0xff]
          %v2036 = vld [vmem:[#allocation9 + $0x8] sm:$0xff]
          %v2037 = vld [vmem:[#allocation9 + $0x10] sm:$0xff]
          %v2038 = vld [vmem:[#allocation9 + $0x18] sm:$0xff]
          %v2039 = vld [vmem:[#allocation9 + $0x20] sm:$0xff]
          %v2040 = vld [vmem:[#allocation9 + $0x28] sm:$0xff]
          %v2041 = vld [vmem:[#allocation9 + $0x30] sm:$0xff]
          %v2042 = vld [vmem:[#allocation9 + $0x38] sm:$0xff]
          %v2043 = vld [vmem:[#allocation9 + $0x40] sm:$0xff]
          %v2044 = vld [vmem:[#allocation9 + $0x48] sm:$0xff]
          %v2045 = vld [vmem:[#allocation9 + $0x50] sm:$0xff]
          %v2046 = vld [vmem:[#allocation9 + $0x58] sm:$0xff]
          %v2047 = vld [vmem:[#allocation9 + $0x60] sm:$0xff]
          %v2048 = vld [vmem:[#allocation9 + $0x68] sm:$0xff]
          %v2049 = vld [vmem:[#allocation9 + $0x70] sm:$0xff]
          %v2050 = vld [vmem:[#allocation9 + $0x78] sm:$0xff]
          %v2051 = vld [vmem:[#allocation9 + $0x80] sm:$0xff]
          %v2052 = vld [vmem:[#allocation9 + $0x88] sm:$0xff]
          %v2053 = vld [vmem:[#allocation9 + $0x90] sm:$0xff]
          %v2054 = vld [vmem:[#allocation9 + $0x98] sm:$0xff]
          %v2055 = vld [vmem:[#allocation9 + $0xa0] sm:$0xff]
          %v2056 = vld [vmem:[#allocation9 + $0xa8] sm:$0xff]
          %v2057 = vld [vmem:[#allocation9 + $0xb0] sm:$0xff]
          %v2058 = vld [vmem:[#allocation9 + $0xb8] sm:$0xff]
          %v2059 = vld [vmem:[#allocation9 + $0xc0] sm:$0xff]
          %v2060 = vld [vmem:[#allocation9 + $0xc8] sm:$0xff]
          %v2061 = vld [vmem:[#allocation9 + $0xd0] sm:$0xff]
          %v2062 = vld [vmem:[#allocation9 + $0xd8] sm:$0xff]
          %v2063 = vld [vmem:[#allocation9 + $0xe0] sm:$0xff]
          %v2064 = vld [vmem:[#allocation9 + $0xe8] sm:$0xff]
          %v2065 = vld [vmem:[#allocation9 + $0xf0] sm:$0xff]
          %v2066 = vld [vmem:[#allocation9 + $0xf8] sm:$0xff]
          %v2099 = vunpack.c.l.b16 %v2035
          %v2100 = vunpack.c.h.b16 %v2035
          %v2101 = vunpack.c.l.b16 %v2036
          %v2102 = vunpack.c.h.b16 %v2036
          %v2103 = vunpack.c.l.b16 %v2037
          %v2104 = vunpack.c.h.b16 %v2037
          %v2105 = vunpack.c.l.b16 %v2038
          %v2106 = vunpack.c.h.b16 %v2038
          %v2107 = vunpack.c.l.b16 %v2039
          %v2108 = vunpack.c.h.b16 %v2039
          %v2109 = vunpack.c.l.b16 %v2040
          %v2110 = vunpack.c.h.b16 %v2040
          %v2111 = vunpack.c.l.b16 %v2041
          %v2112 = vunpack.c.h.b16 %v2041
          %v2113 = vunpack.c.l.b16 %v2042
          %v2114 = vunpack.c.h.b16 %v2042
          %v2115 = vunpack.c.l.b16 %v2043
          %v2116 = vunpack.c.h.b16 %v2043
          %v2117 = vunpack.c.l.b16 %v2044
          %v2118 = vunpack.c.h.b16 %v2044
          %v2119 = vunpack.c.l.b16 %v2045
          %v2120 = vunpack.c.h.b16 %v2045
          %v2121 = vunpack.c.l.b16 %v2046
          %v2122 = vunpack.c.h.b16 %v2046
          %v2123 = vunpack.c.l.b16 %v2047
          %v2124 = vunpack.c.h.b16 %v2047
          %v2125 = vunpack.c.l.b16 %v2048
          %v2126 = vunpack.c.h.b16 %v2048
          %v2127 = vunpack.c.l.b16 %v2049
          %v2128 = vunpack.c.h.b16 %v2049
          %v2129 = vunpack.c.l.b16 %v2050
          %v2130 = vunpack.c.h.b16 %v2050
          %v2131 = vunpack.c.l.b16 %v2051
          %v2132 = vunpack.c.h.b16 %v2051
          %v2133 = vunpack.c.l.b16 %v2052
          %v2134 = vunpack.c.h.b16 %v2052
          %v2135 = vunpack.c.l.b16 %v2053
          %v2136 = vunpack.c.h.b16 %v2053
          %v2137 = vunpack.c.l.b16 %v2054
          %v2138 = vunpack.c.h.b16 %v2054
          %v2139 = vunpack.c.l.b16 %v2055
          %v2140 = vunpack.c.h.b16 %v2055
          %v2141 = vunpack.c.l.b16 %v2056
          %v2142 = vunpack.c.h.b16 %v2056
          %v2143 = vunpack.c.l.b16 %v2057
          %v2144 = vunpack.c.h.b16 %v2057
          %v2145 = vunpack.c.l.b16 %v2058
          %v2146 = vunpack.c.h.b16 %v2058
          %v2147 = vunpack.c.l.b16 %v2059
          %v2148 = vunpack.c.h.b16 %v2059
          %v2149 = vunpack.c.l.b16 %v2060
          %v2150 = vunpack.c.h.b16 %v2060
          %v2151 = vunpack.c.l.b16 %v2061
          %v2152 = vunpack.c.h.b16 %v2061
          %v2153 = vunpack.c.l.b16 %v2062
          %v2154 = vunpack.c.h.b16 %v2062
          %v2155 = vunpack.c.l.b16 %v2063
          %v2156 = vunpack.c.h.b16 %v2063
          %v2157 = vunpack.c.l.b16 %v2064
          %v2158 = vunpack.c.h.b16 %v2064
          %v2159 = vunpack.c.l.b16 %v2065
          %v2160 = vunpack.c.h.b16 %v2065
          %v2161 = vunpack.c.l.b16 %v2066
          %v2162 = vunpack.c.h.b16 %v2066
          %v2163 = vpack.c.b16 %v2101, %v2099
          %v2164 = vpack.c.b16 %v2102, %v2100
          %v2165 = vpack.c.b16 %v2105, %v2103
          %v2166 = vpack.c.b16 %v2106, %v2104
          %v2167 = vpack.c.b16 %v2109, %v2107
          %v2168 = vpack.c.b16 %v2110, %v2108
          %v2169 = vpack.c.b16 %v2113, %v2111
          %v2170 = vpack.c.b16 %v2114, %v2112
          %v2171 = vpack.c.b16 %v2117, %v2115
          %v2172 = vpack.c.b16 %v2118, %v2116
          %v2173 = vpack.c.b16 %v2121, %v2119
          %v2174 = vpack.c.b16 %v2122, %v2120
          %v2175 = vpack.c.b16 %v2125, %v2123
          %v2176 = vpack.c.b16 %v2126, %v2124
          %v2177 = vpack.c.b16 %v2129, %v2127
          %v2178 = vpack.c.b16 %v2130, %v2128
          %v2179 = vpack.c.b16 %v2133, %v2131
          %v2180 = vpack.c.b16 %v2134, %v2132
          %v2181 = vpack.c.b16 %v2137, %v2135
          %v2182 = vpack.c.b16 %v2138, %v2136
          %v2183 = vpack.c.b16 %v2141, %v2139
          %v2184 = vpack.c.b16 %v2142, %v2140
          %v2185 = vpack.c.b16 %v2145, %v2143
          %v2186 = vpack.c.b16 %v2146, %v2144
          %v2187 = vpack.c.b16 %v2149, %v2147
          %v2188 = vpack.c.b16 %v2150, %v2148
          %v2189 = vpack.c.b16 %v2153, %v2151
          %v2190 = vpack.c.b16 %v2154, %v2152
          %v2191 = vpack.c.b16 %v2157, %v2155
          %v2192 = vpack.c.b16 %v2158, %v2156
          %v2193 = vpack.c.b16 %v2161, %v2159
          %v2194 = vpack.c.b16 %v2162, %v2160
          %2227 = vmatprep.subr.bf16.mxu0 %v2178
          %2228 = vmatpush1.bf16.msra.mxu0 %v2177
          %2229 = vmatprep.subr.bf16.mxu0 %v2176
          %2230 = vmatpush1.bf16.msra.mxu0 %v2175
          %2231 = vmatprep.subr.bf16.mxu0 %v2174
          %2232 = vmatpush1.bf16.msra.mxu0 %v2173
          %2233 = vmatprep.subr.bf16.mxu0 %v2172
          %2234 = vmatpush1.bf16.msra.mxu0 %v2171
          %2235 = vmatprep.subr.bf16.mxu0 %v2170
          %2236 = vmatpush1.bf16.msra.mxu0 %v2169
          %2237 = vmatprep.subr.bf16.mxu0 %v2168
          %2238 = vmatpush1.bf16.msra.mxu0 %v2167
          %2239 = vmatprep.subr.bf16.mxu0 %v2166
          %2240 = vmatpush1.bf16.msra.mxu0 %v2165
          %2241 = vmatprep.subr.bf16.mxu0 %v2164
          %2242 = vmatpush1.bf16.msra.mxu0 %v2163
          %2243 = vmatprep.subr.bf16.mxu0 %v2194
          %2244 = vmatpush2.bf16.msra.mxu0 %v2193
          %2245 = vmatprep.subr.bf16.mxu0 %v2192
          %2246 = vmatpush2.bf16.msra.mxu0 %v2191
          %2247 = vmatprep.subr.bf16.mxu0 %v2190
          %2248 = vmatpush2.bf16.msra.mxu0 %v2189
          %2249 = vmatprep.subr.bf16.mxu0 %v2188
          %2250 = vmatpush2.bf16.msra.mxu0 %v2187
          %2251 = vmatprep.subr.bf16.mxu0 %v2186
          %2252 = vmatpush2.bf16.msra.mxu0 %v2185
          %2253 = vmatprep.subr.bf16.mxu0 %v2184
          %2254 = vmatpush2.bf16.msra.mxu0 %v2183
          %2255 = vmatprep.subr.bf16.mxu0 %v2182
          %2256 = vmatpush2.bf16.msra.mxu0 %v2181
          %2257 = vmatprep.subr.bf16.mxu0 %v2180
          %2258 = vmatpush2.bf16.msra.mxu0 %v2179
          %2259 = vmatprep.mubr.bf16.mxu0 %v2020
          %2260 = vmatmul.mubr.bf16.gmra.mxu0 %v2019
          %v2261 = vpop.f32.mrf.mxu0
          %v2262 = vadd.f32 0.0, %v2261
          %v2263 = vpop.f32.mrf.mxu0
          %v2264 = vadd.f32 0.0, %v2263
          %v2265 = vpop.f32.mrf.mxu0
          %v2266 = vadd.f32 0.0, %v2265
          %v2267 = vpop.f32.mrf.mxu0
          %v2268 = vadd.f32 0.0, %v2267
          %2269 = vmatprep.mubr.bf16.mxu0 %v2022
          %2270 = vmatmul.mubr.bf16.gmra.mxu0 %v2021
          %v2271 = vpop.f32.mrf.mxu0
          %v2272 = vadd.f32 0.0, %v2271
          %v2273 = vpop.f32.mrf.mxu0
          %v2274 = vadd.f32 0.0, %v2273
          %v2275 = vpop.f32.mrf.mxu0
          %v2276 = vadd.f32 0.0, %v2275
          %v2277 = vpop.f32.mrf.mxu0
          %v2278 = vadd.f32 0.0, %v2277
          %2279 = vmatprep.mubr.bf16.mxu0 %v2024
          %2280 = vmatmul.mubr.bf16.gmra.mxu0 %v2023
          %v2281 = vpop.f32.mrf.mxu0
          %v2282 = vadd.f32 0.0, %v2281
          %v2283 = vpop.f32.mrf.mxu0
          %v2284 = vadd.f32 0.0, %v2283
          %v2285 = vpop.f32.mrf.mxu0
          %v2286 = vadd.f32 0.0, %v2285
          %v2287 = vpop.f32.mrf.mxu0
          %v2288 = vadd.f32 0.0, %v2287
          %2289 = vmatprep.mubr.bf16.mxu0 %v2026
          %2290 = vmatmul.mubr.bf16.gmra.mxu0 %v2025
          %v2291 = vpop.f32.mrf.mxu0
          %v2292 = vadd.f32 0.0, %v2291
          %v2293 = vpop.f32.mrf.mxu0
          %v2294 = vadd.f32 0.0, %v2293
          %v2295 = vpop.f32.mrf.mxu0
          %v2296 = vadd.f32 0.0, %v2295
          %v2297 = vpop.f32.mrf.mxu0
          %v2298 = vadd.f32 0.0, %v2297
          %2299 = vmatprep.mubr.bf16.mxu0 %v2028
          %2300 = vmatmul.mubr.bf16.gmra.mxu0 %v2027
          %v2301 = vpop.f32.mrf.mxu0
          %v2302 = vadd.f32 0.0, %v2301
          %v2303 = vpop.f32.mrf.mxu0
          %v2304 = vadd.f32 0.0, %v2303
          %v2305 = vpop.f32.mrf.mxu0
          %v2306 = vadd.f32 0.0, %v2305
          %v2307 = vpop.f32.mrf.mxu0
          %v2308 = vadd.f32 0.0, %v2307
          %2309 = vmatprep.mubr.bf16.mxu0 %v2030
          %2310 = vmatmul.mubr.bf16.gmra.mxu0 %v2029
          %v2311 = vpop.f32.mrf.mxu0
          %v2312 = vadd.f32 0.0, %v2311
          %v2313 = vpop.f32.mrf.mxu0
          %v2314 = vadd.f32 0.0, %v2313
          %v2315 = vpop.f32.mrf.mxu0
          %v2316 = vadd.f32 0.0, %v2315
          %v2317 = vpop.f32.mrf.mxu0
          %v2318 = vadd.f32 0.0, %v2317
          %2319 = vmatprep.mubr.bf16.mxu0 %v2032
          %2320 = vmatmul.mubr.bf16.gmra.mxu0 %v2031
          %v2321 = vpop.f32.mrf.mxu0
          %v2322 = vadd.f32 0.0, %v2321
          %v2323 = vpop.f32.mrf.mxu0
          %v2324 = vadd.f32 0.0, %v2323
          %v2325 = vpop.f32.mrf.mxu0
          %v2326 = vadd.f32 0.0, %v2325
          %v2327 = vpop.f32.mrf.mxu0
          %v2328 = vadd.f32 0.0, %v2327
          %2329 = vmatprep.mubr.bf16.mxu0 %v2034
          %2330 = vmatmul.mubr.bf16.gmra.mxu0 %v2033
          %v2331 = vpop.f32.mrf.mxu0
          %v2332 = vadd.f32 0.0, %v2331
          %v2333 = vpop.f32.mrf.mxu0
          %v2334 = vadd.f32 0.0, %v2333
          %v2335 = vpop.f32.mrf.mxu0
          %v2336 = vadd.f32 0.0, %v2335
          %v2337 = vpop.f32.mrf.mxu0
          %v2338 = vadd.f32 0.0, %v2337
          %2339 = vdwg.mxu0
          %v2340 = vpack.c.bf16 %v2266, %v2262
          %v2341 = vpack.c.bf16 %v2268, %v2264
          %v2342 = vpack.c.bf16 %v2276, %v2272
          %v2343 = vpack.c.bf16 %v2278, %v2274
          %v2344 = vpack.c.bf16 %v2286, %v2282
          %v2345 = vpack.c.bf16 %v2288, %v2284
          %v2346 = vpack.c.bf16 %v2296, %v2292
          %v2347 = vpack.c.bf16 %v2298, %v2294
          %v2348 = vpack.c.bf16 %v2306, %v2302
          %v2349 = vpack.c.bf16 %v2308, %v2304
          %v2350 = vpack.c.bf16 %v2316, %v2312
          %v2351 = vpack.c.bf16 %v2318, %v2314
          %v2352 = vpack.c.bf16 %v2326, %v2322
          %v2353 = vpack.c.bf16 %v2328, %v2324
          %v2354 = vpack.c.bf16 %v2336, %v2332
          %v2355 = vpack.c.bf16 %v2338, %v2334
          %v2372 = vunpack.c.l.b16 %v2340
          %v2373 = vunpack.c.l.b16 %v2341
          %v2374 = vunpack.c.h.b16 %v2340
          %v2375 = vunpack.c.h.b16 %v2341
          %v2376 = vunpack.c.l.b16 %v2342
          %v2377 = vunpack.c.l.b16 %v2343
          %v2378 = vunpack.c.h.b16 %v2342
          %v2379 = vunpack.c.h.b16 %v2343
          %v2380 = vunpack.c.l.b16 %v2344
          %v2381 = vunpack.c.l.b16 %v2345
          %v2382 = vunpack.c.h.b16 %v2344
          %v2383 = vunpack.c.h.b16 %v2345
          %v2384 = vunpack.c.l.b16 %v2346
          %v2385 = vunpack.c.l.b16 %v2347
          %v2386 = vunpack.c.h.b16 %v2346
          %v2387 = vunpack.c.h.b16 %v2347
          %v2388 = vunpack.c.l.b16 %v2348
          %v2389 = vunpack.c.l.b16 %v2349
          %v2390 = vunpack.c.h.b16 %v2348
          %v2391 = vunpack.c.h.b16 %v2349
          %v2392 = vunpack.c.l.b16 %v2350
          %v2393 = vunpack.c.l.b16 %v2351
          %v2394 = vunpack.c.h.b16 %v2350
          %v2395 = vunpack.c.h.b16 %v2351
          %v2396 = vunpack.c.l.b16 %v2352
          %v2397 = vunpack.c.l.b16 %v2353
          %v2398 = vunpack.c.h.b16 %v2352
          %v2399 = vunpack.c.h.b16 %v2353
          %v2400 = vunpack.c.l.b16 %v2354
          %v2401 = vunpack.c.l.b16 %v2355
          %v2402 = vunpack.c.h.b16 %v2354
          %v2403 = vunpack.c.h.b16 %v2355
          %v2404 = vpack.c.b16 %v2373, %v2372
          %v2405 = vpack.c.b16 %v2375, %v2374
          %v2406 = vpack.c.b16 %v2377, %v2376
          %v2407 = vpack.c.b16 %v2379, %v2378
          %v2408 = vpack.c.b16 %v2381, %v2380
          %v2409 = vpack.c.b16 %v2383, %v2382
          %v2410 = vpack.c.b16 %v2385, %v2384
          %v2411 = vpack.c.b16 %v2387, %v2386
          %v2412 = vpack.c.b16 %v2389, %v2388
          %v2413 = vpack.c.b16 %v2391, %v2390
          %v2414 = vpack.c.b16 %v2393, %v2392
          %v2415 = vpack.c.b16 %v2395, %v2394
          %v2416 = vpack.c.b16 %v2397, %v2396
          %v2417 = vpack.c.b16 %v2399, %v2398
          %v2418 = vpack.c.b16 %v2401, %v2400
          %v2419 = vpack.c.b16 %v2403, %v2402
          %2436 = vst [vmem:[#allocation11] sm:$0xff] %v2404
          %2437 = vst [vmem:[#allocation11 + $0x8] sm:$0xff] %v2405
          %2438 = vst [vmem:[#allocation11 + $0x10] sm:$0xff] %v2406
          %2439 = vst [vmem:[#allocation11 + $0x18] sm:$0xff] %v2407
          %2440 = vst [vmem:[#allocation11 + $0x20] sm:$0xff] %v2408
          %2441 = vst [vmem:[#allocation11 + $0x28] sm:$0xff] %v2409
          %2442 = vst [vmem:[#allocation11 + $0x30] sm:$0xff] %v2410
          %2443 = vst [vmem:[#allocation11 + $0x38] sm:$0xff] %v2411
          %2444 = vst [vmem:[#allocation11 + $0x40] sm:$0xff] %v2412
          %2445 = vst [vmem:[#allocation11 + $0x48] sm:$0xff] %v2413
          %2446 = vst [vmem:[#allocation11 + $0x50] sm:$0xff] %v2414
          %2447 = vst [vmem:[#allocation11 + $0x58] sm:$0xff] %v2415
          %2448 = vst [vmem:[#allocation11 + $0x60] sm:$0xff] %v2416
          %2449 = vst [vmem:[#allocation11 + $0x68] sm:$0xff] %v2417
          %2450 = vst [vmem:[#allocation11 + $0x70] sm:$0xff] %v2418
          %2451 = vst [vmem:[#allocation11 + $0x78] sm:$0xff] %v2419
        $region60: #{tpu_custom_call.1} parent=35 // pred_fallthru
          _
        // Predicated region
        $region61: #{tpu_custom_call.1} parent=35 // pred_check
          %p2452 = pneg %p149
        $region62: #{tpu_custom_call.1} parent=35 // pred_check_branch
          %2454 = sbr.rel (%p2452) target = $region64
        $region63: #{tpu_custom_call.1} parent=35 // pred_region
          %s2455 = smul.u32 16, %s27
          %s2457 = ssub.s32 2048, 2048
          %2458 = vsyncadd [#allocation5], %s2457
          %s2459 = smul.addr %s2455, 2
          %s2460 = smul.addr %s2459, 64
          %s2461 = scalar_lea.hbm %s4, %s2460
          %s2462 = sshll.u32 [#allocation11], 4
          %s2463 = int_to_ptr.vmem [resolvable:$true] %s2462
          %2468 = dma.vmem_to_hbm [thread:$0]  %s2463, 2048, %s2461, [#allocation5], 128, 128, 8
        $region64: #{tpu_custom_call.1} parent=35 // pred_fallthru
          _
        // Predicated region
        $region65: #{tpu_custom_call.1} parent=35 // pred_check
          %p2469 = pneg %p149
        $region66: #{tpu_custom_call.1} parent=35 // pred_check_branch
          %2471 = sbr.rel (%p2469) target = $region68
        $region67: #{tpu_custom_call.1} parent=35 // pred_region
          %2472 = dma.done [#allocation5], 2048
        $region68: #{tpu_custom_call.1} parent=35 // pred_fallthru
          _
      $region36: #{tpu_custom_call.1} parent=5 // pred_fallthru
        _
      %p2473 = scmp.le.s32.totalorder 2, %s18
      // Predicated region
      $region69: #{tpu_custom_call.1} parent=5 // pred_check
        %p2474 = pneg %p2473
      $region70: #{tpu_custom_call.1} parent=5 // pred_check_branch
        %2476 = sbr.rel (%p2474) target = $region72
      $region71: #{tpu_custom_call.1} parent=5 // pred_region
        %s2477 = ssub.s32 %s18, 2
      $region72: #{tpu_custom_call.1} parent=5 // pred_fallthru
        _
    $region6: #{tpu_custom_call.1} parent=1 // loop_footer
      %s22 = sadd.s32 1, %s18
    $region7: #{tpu_custom_call.1} parent=1 // loop_footer_branch
      %17 = sbr.rel target = $region3
    $region8: #{tpu_custom_call.1} parent=1 // loop_exit
      _
    %2478 = vsyncpa [#allocation4], 1
    %s2479 = scalar_lea.sflag [#allocation4], 1
    %2480 = vsyncpa %s2479, 1
    %2481 = vsyncpa [#allocation7], 1
    %s2482 = scalar_lea.sflag [#allocation7], 1
    %2483 = vsyncpa %s2482, 1
    %2484 = vsyncpa [#allocation10], 1
    %2485 = vsyncpa [#allocation5], 1
    %s2486 = scalar_lea.sflag [#allocation5], 1
    %2487 = vsyncpa %s2486, 1

</llo_original>
